<compile_context>
chip_gen: v5e
topology: v5e:2x2
jax: 0.10.0
libtpu: 0.0.40
codegen_flags: <defaults>
</compile_context>

<pallas_src>
import functools

import jax
import jax.numpy as jnp
from jax.experimental import pallas as pl
from jax.experimental.pallas import tpu as pltpu


_PADL = 8  # sublane-aligned column offset of the interior inside the padded scratch


def _sigmoid(x):
    # explicit exp-based sigmoid (EUP) — used by both kernels and the reference
    return 1.0 / (1.0 + jnp.exp(-x))


def _inverted_conv_kernel(x_ref, wx_ref, wg_ref, ox_ref, og_ref):
    """Pointwise (1x1) expansion conv + SiLU; GLU halves written as two outputs."""
    x = x_ref[0]                                                    # (tile_n, Cin)
    hx = jnp.dot(x, wx_ref[...], preferred_element_type=jnp.float32)
    hg = jnp.dot(x, wg_ref[...], preferred_element_type=jnp.float32)
    ox_ref[0] = (hx * _sigmoid(hx)).astype(ox_ref.dtype)            # SiLU, single store
    og_ref[0] = (hg * _sigmoid(hg)).astype(og_ref.dtype)


def _dw_glu_point_kernel(hx_ref, hg_ref, wdx_ref, wdg_ref, w3_ref, o_ref,
                         pad_ref, *, H, W):
    """Depthwise 3x3 ("same" pad) -> GLU (x * SiLU(gate)) -> pointwise 1x1."""
    # Zero the scratch every grid step so the 1-pixel halo always reads zeros.
    # (Unconditional — stays correct when the batch axis is sharded across the
    #  two TensorCores of a v7x chip.)
    pad_ref[...] = jnp.zeros_like(pad_ref)

    def depthwise(h_blk, w_ref):
        # Interior lives at sublane offset _PADL (multiple of 8) -> aligned store,
        # outer-dim offset 1 for the H halo is free.
        pad_ref[1:H + 1, _PADL:_PADL + W, :] = h_blk
        w = w_ref[...].astype(jnp.float32)                          # (3, 3, Ch)
        acc = None
        # kw outermost: one sublane-offset window load per kw (3 relayouts, not 9);
        # kh then slices the leading axis of the loaded value (free vreg subset).
        for kw in range(3):
            c0 = _PADL - 1 + kw
            xw = pad_ref[:, c0:c0 + W, :].astype(jnp.float32)       # (H+2, W, Ch)
            for kh in range(3):
                term = xw[kh:kh + H] * w[kh, kw]                    # accumulate in vregs
                acc = term if acc is None else acc + term
        return acc                                                  # (H, W, Ch) f32

    gate = depthwise(hg_ref[0], wdg_ref)
    z = gate * _sigmoid(gate)                                       # SiLU(gate)
    xpart = depthwise(hx_ref[0], wdx_ref)
    z = xpart * z                                                   # GLU

    ch = w3_ref.shape[0]
    z2d = z.reshape(H * W, ch).astype(w3_ref.dtype)                 # W % 8 == 0 -> free merge
    out = jnp.dot(z2d, w3_ref[...], preferred_element_type=jnp.float32)
    o_ref[0] = out.astype(o_ref.dtype)                              # single store


def _pick_row_tile(n):
    for t in (512, 256, 128, 64, 32, 16, 8):
        if n % t == 0:
            return t
    return n


def glu_mbconv_forward(x_bnc, w_inv_oihw, w_dw_oihw, w_pt_oihw, HW=None):
    """GLUMBConv.forward with default args (bias-free convs, SiLU/SiLU/None acts)."""
    B, N, Cin = x_bnc.shape
    if HW is None:
        H = W = int(N ** 0.5)
    else:
        H, W = HW
    assert H * W == N
    C2, Cin_w, _, _ = w_inv_oihw.shape
    assert Cin_w == Cin and C2 % 2 == 0
    Ch = C2 // 2
    Cout = w_pt_oihw.shape[0]
    assert w_pt_oihw.shape[1] == Ch
    dtype = x_bnc.dtype

    # Parameter-sized reshapes only (cheap, outside the hot path). Channels-last,
    # GLU halves split up front so kernels never slice the lane axis mid-block.
    w1 = jnp.transpose(w_inv_oihw[:, :, 0, 0], (1, 0)).astype(dtype)      # (Cin, 2*Ch)
    w1_x, w1_g = w1[:, :Ch], w1[:, Ch:]
    wdw = jnp.transpose(w_dw_oihw[:, 0, :, :], (1, 2, 0)).astype(dtype)   # (3, 3, 2*Ch)
    wdw_x, wdw_g = wdw[:, :, :Ch], wdw[:, :, Ch:]
    w3 = jnp.transpose(w_pt_oihw[:, :, 0, 0], (1, 0)).astype(dtype)       # (Ch, Cout)

    # ---- Kernel 1: 1x1 expansion conv + SiLU, tiled over (batch, rows) --------
    tile_n = _pick_row_tile(N)
    hx, hg = pl.pallas_call(
        _inverted_conv_kernel,
        out_shape=(jax.ShapeDtypeStruct((B, N, Ch), dtype),
                   jax.ShapeDtypeStruct((B, N, Ch), dtype)),
        grid=(B, N // tile_n),
        in_specs=[
            pl.BlockSpec((1, tile_n, Cin), lambda b, i: (b, i, 0)),
            pl.BlockSpec((Cin, Ch), lambda b, i: (0, 0)),
            pl.BlockSpec((Cin, Ch), lambda b, i: (0, 0)),
        ],
        out_specs=(pl.BlockSpec((1, tile_n, Ch), lambda b, i: (b, i, 0)),
                   pl.BlockSpec((1, tile_n, Ch), lambda b, i: (b, i, 0))),
        compiler_params=pltpu.CompilerParams(
            dimension_semantics=("parallel", "parallel")),
    )(x_bnc, w1_x, w1_g)

    # Free (metadata-only) reshapes of the intermediates to NHWC.
    hx4 = hx.reshape(B, H, W, Ch)
    hg4 = hg.reshape(B, H, W, Ch)

    # ---- Kernel 2: depthwise 3x3 + GLU + pointwise 1x1, gridded over batch ----
    out = pl.pallas_call(
        functools.partial(_dw_glu_point_kernel, H=H, W=W),
        out_shape=jax.ShapeDtypeStruct((B, N, Cout), dtype),
        grid=(B,),
        in_specs=[
            pl.BlockSpec((1, H, W, Ch), lambda b: (b, 0, 0, 0)),
            pl.BlockSpec((1, H, W, Ch), lambda b: (b, 0, 0, 0)),
            pl.BlockSpec((3, 3, Ch), lambda b: (0, 0, 0)),
            pl.BlockSpec((3, 3, Ch), lambda b: (0, 0, 0)),
            pl.BlockSpec((Ch, Cout), lambda b: (0, 0)),
        ],
        out_specs=pl.BlockSpec((1, N, Cout), lambda b: (b, 0, 0)),
        scratch_shapes=[pltpu.VMEM((H + 2, W + 2 * _PADL, Ch), dtype)],
        compiler_params=pltpu.CompilerParams(
            dimension_semantics=("parallel",)),
    )(hx4, hg4, wdw_x, wdw_g, w3)

    return out


def _reference(x_bnc, w_inv_oihw, w_dw_oihw, w_pt_oihw):
    B, N, Cin = x_bnc.shape
    H = W = int(N ** 0.5)
    C2 = w_inv_oihw.shape[0]
    Ch = C2 // 2
    Cout = w_pt_oihw.shape[0]
    dn = ('NCHW', 'OIHW', 'NCHW')
    xi = jnp.transpose(x_bnc.reshape(B, H, W, Cin), (0, 3, 1, 2))
    h = jax.lax.conv_general_dilated(xi, w_inv_oihw, (1, 1), 'VALID',
                                     dimension_numbers=dn)
    h = h * _sigmoid(h)                                    # SiLU
    d = jax.lax.conv_general_dilated(h, w_dw_oihw, (1, 1), ((1, 1), (1, 1)),
                                     dimension_numbers=dn,
                                     feature_group_count=C2)
    xp, gate = d[:, :Ch], d[:, Ch:]
    z = xp * (gate * _sigmoid(gate))                       # GLU
    o = jax.lax.conv_general_dilated(z, w_pt_oihw, (1, 1), 'VALID',
                                     dimension_numbers=dn)
    return jnp.transpose(o.reshape(B, Cout, N), (0, 2, 1))


if __name__ == "__main__":
    # Small shapes consistent with GLUMBConv(in_features=32, hidden_features=32):
    # x is (B, N, C) with N = H*W.
    B, H, W = 2, 16, 16
    N = H * W
    Cin, Chid = 32, 32
    C2 = 2 * Chid
    Cout = Cin                     # out_feature defaults to in_features

    key = jax.random.PRNGKey(0)
    kx, k1, k2, k3 = jax.random.split(key, 4)
    x = jax.random.normal(kx, (B, N, Cin), dtype=jnp.float32)
    w_inv = jax.random.normal(k1, (C2, Cin, 1, 1), dtype=jnp.float32) * 0.15
    w_dw = jax.random.normal(k2, (C2, 1, 3, 3), dtype=jnp.float32) * 0.3
    w_pt = jax.random.normal(k3, (Cout, Chid, 1, 1), dtype=jnp.float32) * 0.15

    out = glu_mbconv_forward(x, w_inv, w_dw, w_pt)
    out = jax.block_until_ready(out)

    ref = _reference(x, w_inv, w_dw, w_pt)
    assert out.shape == (B, N, Cout), out.shape
    max_err = float(jnp.max(jnp.abs(out - ref)))
    assert jnp.allclose(out, ref, atol=2e-4, rtol=2e-4), max_err

    print("KERNEL_OK")
</pallas_src>

<mosaic_0001>
module attributes {stable_mosaic.version = 11 : i64} {
  func.func @_inverted_conv_kernel(%arg0: i32, %arg1: i32, %arg2: memref<1x256x32xf32, #tpu.memory_space<vmem>>, %arg3: memref<32x32xf32, #tpu.memory_space<vmem>>, %arg4: memref<32x32xf32, #tpu.memory_space<vmem>>, %arg5: memref<1x256x32xf32, #tpu.memory_space<vmem>>, %arg6: memref<1x256x32xf32, #tpu.memory_space<vmem>>) attributes {dimension_semantics = [#tpu.dimension_semantics<parallel>, #tpu.dimension_semantics<parallel>], iteration_bounds = array<i64: 2, 1>, scalar_prefetch = 0 : i64, scratch_operands = 0 : i64, tpu.core_type = #tpu.core_type<tc>, window_params = [{transform_indices = @transform_0, window_bounds = array<i64: 1, 256, 32>}, {pipeline_mode = #tpu.pipeline_mode<synchronous>, transform_indices = @transform_1, window_bounds = array<i64: 32, 32>}, {pipeline_mode = #tpu.pipeline_mode<synchronous>, transform_indices = @transform_2, window_bounds = array<i64: 32, 32>}, {transform_indices = @transform_3, window_bounds = array<i64: 1, 256, 32>}, {transform_indices = @transform_4, window_bounds = array<i64: 1, 256, 32>}]} {
    %c0 = arith.constant 0 : index
    %c0_0 = arith.constant 0 : index
    %c0_1 = arith.constant 0 : index
    %0 = vector.load %arg2[%c0, %c0_0, %c0_1] : memref<1x256x32xf32, #tpu.memory_space<vmem>>, vector<1x256x32xf32>
    %1 = vector.shape_cast %0 : vector<1x256x32xf32> to vector<256x32xf32>
    %c0_2 = arith.constant 0 : index
    %c0_3 = arith.constant 0 : index
    %2 = vector.load %arg3[%c0_2, %c0_3] : memref<32x32xf32, #tpu.memory_space<vmem>>, vector<32x32xf32>
    %cst = arith.constant dense<0.000000e+00> : vector<256x32xf32>
    %3 = tpu.matmul %1, %2, %cst {dimension_numbers = #tpu.dot_dimension_numbers<[1], [0], [0], [1], [0, 0, 1, 1], [], []>} : vector<256x32xf32>, vector<32x32xf32>, vector<256x32xf32> -> vector<256x32xf32>
    %c0_4 = arith.constant 0 : index
    %c0_5 = arith.constant 0 : index
    %4 = vector.load %arg4[%c0_4, %c0_5] : memref<32x32xf32, #tpu.memory_space<vmem>>, vector<32x32xf32>
    %cst_6 = arith.constant dense<0.000000e+00> : vector<256x32xf32>
    %5 = tpu.matmul %1, %4, %cst_6 {dimension_numbers = #tpu.dot_dimension_numbers<[1], [0], [0], [1], [0, 0, 1, 1], [], []>} : vector<256x32xf32>, vector<32x32xf32>, vector<256x32xf32> -> vector<256x32xf32>
    %cst_7 = arith.constant 0.000000e+00 : f32
    %6 = vector.broadcast %cst_7 : f32 to vector<256x32xf32>
    %7 = arith.subf %6, %3 : vector<256x32xf32>
    %8 = math.exp %7 : vector<256x32xf32>
    %cst_8 = arith.constant 1.000000e+00 : f32
    %9 = vector.broadcast %cst_8 : f32 to vector<256x32xf32>
    %10 = arith.addf %9, %8 : vector<256x32xf32>
    %cst_9 = arith.constant 1.000000e+00 : f32
    %11 = vector.broadcast %cst_9 : f32 to vector<256x32xf32>
    %12 = arith.divf %11, %10 : vector<256x32xf32>
    %13 = arith.mulf %3, %12 : vector<256x32xf32>
    %c0_10 = arith.constant 0 : index
    %c0_11 = arith.constant 0 : index
    %c0_12 = arith.constant 0 : index
    %14 = vector.load %arg5[%c0_10, %c0_11, %c0_12] : memref<1x256x32xf32, #tpu.memory_space<vmem>>, vector<1x256x32xf32>
    %15 = vector.shape_cast %14 : vector<1x256x32xf32> to vector<256x32xf32>
    %16 = vector.shape_cast %13 : vector<256x32xf32> to vector<1x256x32xf32>
    tpu.vector_store %arg5[%c0_10, %c0_11, %c0_12], %16 {strides = array<i32>} : memref<1x256x32xf32, #tpu.memory_space<vmem>>, vector<1x256x32xf32>,
    %cst_13 = arith.constant 0.000000e+00 : f32
    %17 = vector.broadcast %cst_13 : f32 to vector<256x32xf32>
    %18 = arith.subf %17, %5 : vector<256x32xf32>
    %19 = math.exp %18 : vector<256x32xf32>
    %cst_14 = arith.constant 1.000000e+00 : f32
    %20 = vector.broadcast %cst_14 : f32 to vector<256x32xf32>
    %21 = arith.addf %20, %19 : vector<256x32xf32>
    %cst_15 = arith.constant 1.000000e+00 : f32
    %22 = vector.broadcast %cst_15 : f32 to vector<256x32xf32>
    %23 = arith.divf %22, %21 : vector<256x32xf32>
    %24 = arith.mulf %5, %23 : vector<256x32xf32>
    %c0_16 = arith.constant 0 : index
    %c0_17 = arith.constant 0 : index
    %c0_18 = arith.constant 0 : index
    %25 = vector.load %arg6[%c0_16, %c0_17, %c0_18] : memref<1x256x32xf32, #tpu.memory_space<vmem>>, vector<1x256x32xf32>
    %26 = vector.shape_cast %25 : vector<1x256x32xf32> to vector<256x32xf32>
    %27 = vector.shape_cast %24 : vector<256x32xf32> to vector<1x256x32xf32>
    tpu.vector_store %arg6[%c0_16, %c0_17, %c0_18], %27 {strides = array<i32>} : memref<1x256x32xf32, #tpu.memory_space<vmem>>, vector<1x256x32xf32>,
    return
  }
  func.func @transform_0(%arg0: i32, %arg1: i32) -> (i32, i32, i32) {
    %c0_i32 = arith.constant 0 : i32
    %c0_i32_0 = arith.constant 0 : i32
    return %arg0, %arg1, %c0_i32 : i32, i32, i32
  }
  func.func @transform_1(%arg0: i32, %arg1: i32) -> (i32, i32) {
    %c0_i32 = arith.constant 0 : i32
    %c0_i32_0 = arith.constant 0 : i32
    %c0_i32_1 = arith.constant 0 : i32
    return %c0_i32, %c0_i32_0 : i32, i32
  }
  func.func @transform_2(%arg0: i32, %arg1: i32) -> (i32, i32) {
    %c0_i32 = arith.constant 0 : i32
    %c0_i32_0 = arith.constant 0 : i32
    %c0_i32_1 = arith.constant 0 : i32
    return %c0_i32, %c0_i32_0 : i32, i32
  }
  func.func @transform_3(%arg0: i32, %arg1: i32) -> (i32, i32, i32) {
    %c0_i32 = arith.constant 0 : i32
    %c0_i32_0 = arith.constant 0 : i32
    return %arg0, %arg1, %c0_i32 : i32, i32, i32
  }
  func.func @transform_4(%arg0: i32, %arg1: i32) -> (i32, i32, i32) {
    %c0_i32 = arith.constant 0 : i32
    %c0_i32_0 = arith.constant 0 : i32
    return %arg0, %arg1, %c0_i32 : i32, i32, i32
  }
}

</mosaic_0001>

<llo_original>
// kernel: tpu_custom_call.1
$region0: #{tpu_custom_call.1}
  #allocation0 [shape = 'u32[]', space=smem, size = 0x4, offset = 0x4, fixed_abs, tag = 'smem constant byte address 0x4 - core index']
  #allocation1 [shape = 'u32[72,128]{1,0:T(1,128)}', space=vmem, size = 0x9000, scoped, tag = 'internal scratch']
  %s0 = inlined_call_operand.vmem [shape: f32[2,256,32], index: 0, kind: input, shape index: {}]
  %s1 = inlined_call_operand.vmem [shape: f32[32,32], index: 1, kind: input, shape index: {}]
  %s2 = inlined_call_operand.vmem [shape: f32[32,32], index: 2, kind: input, shape index: {}]
  %s3 = inlined_call_operand.vmem [shape: f32[2,256,32], index: 3, kind: output, shape index: {0}]
  %s4 = inlined_call_operand.vmem [shape: f32[2,256,32], index: 4, kind: output, shape index: {1}]
  %5 = xla_tuple %s3, %s4
  %s6 = sld [smem:[#allocation0]]
  $region53: #{tpu_custom_call.1} parent=0
    _
  %s8 = ssub.s32 1, %s6
  %s9 = scalar_select 0, %s8, %s6
  loop: start=0, step=1, limit=4
  $region2: #{tpu_custom_call.1} parent=0 // loop_pre_header
    _
  $region3: #{tpu_custom_call.1} parent=0 // loop_header
    %s11 = sphi 0, %s15
    %p12 = scmp.ge.s32.totalorder %s11, 4
    %s18 = sphi 0, %s30
    %s19 = sphi 0, %s26
    %s20 = sphi 0, %s18
    %s21 = sphi 0, %s19
    %s22 = sphi 0, %s20
    %s23 = sphi 0, %s21
    %s35 = sphi 0, %s37
    %s38 = sphi 0, %s35
    %s39 = sphi 0, %s38
    %s55 = sphi 0, %s39
    %s59 = sphi 0, %s59
    %s61 = sphi 0, %s59
    %s62 = sphi 0, %s61
    %s76 = sphi 0, %s62
    %s80 = sphi 0, %s80
    %s82 = sphi 0, %s80
    %s83 = sphi 0, %s82
    %s97 = sphi 0, %s83
    %s105 = sphi 0, %s107
    %s108 = sphi 0, %s105
    %s109 = sphi 0, %s108
    %s125 = sphi 0, %s109
    %s133 = sphi 0, %s135
    %s136 = sphi 0, %s133
    %s137 = sphi 0, %s136
    %s153 = sphi 0, %s137
  $region4: #{tpu_custom_call.1} parent=0 // loop_header_branch
    %14 = sbr.rel (%p12) target = $region8
  $region5: #{tpu_custom_call.1} parent=0 // loop_body
    %s16 = ssub.s32 %s11, 1
    %s17 = ssub.s32 %s11, 2
    %s24 = sadd.s32 1, %s19
    %p25 = scmp.ge.s32.totalorder %s24, 1
    %s26 = scalar_select %p25, 0, %s24
    %s27 = sadd.s32 1, %s18
    %s28 = scalar_select %p25, %s27, %s18
    %p29 = scmp.ge.s32.totalorder %s28, 2
    %s30 = scalar_select %p29, 0, %s28
    %s31 = ssub.s32 %s18, %s30
    %s32 = ssub.s32 %s19, %s26
    %s33 = sor.u32 %s31, %s32
    %p34 = scmp.eq.s32.totalorder %s33, 0
    %s36 = sadd.s32 %s35, 1
    %s37 = scalar_select %p34, %s35, %s36
    %p40 = pneg %p34
    %p41 = scmp.eq.s32.totalorder %s11, 1
    %p42 = por %p40, %p41
    %p43 = scmp.ne.s32.totalorder %s35, %s38
    %p44 = scmp.eq.s32.totalorder %s11, 0
    %p45 = por %p43, %p44
    %p46 = scmp.ne.s32.totalorder %s35, %s38
    %p47 = scmp.eq.s32.totalorder %s16, 1
    %p48 = por %p46, %p47
    %p49 = scmp.ne.s32.totalorder %s38, %s39
    %p50 = scmp.eq.s32.totalorder %s16, 0
    %p51 = por %p49, %p50
    %p52 = scmp.ne.s32.totalorder %s38, %s39
    %p53 = scmp.eq.s32.totalorder %s17, 1
    %p54 = por %p52, %p53
    %p56 = scmp.ne.s32.totalorder %s39, %s55
    %p57 = scmp.eq.s32.totalorder %s17, 0
    %p58 = por %p56, %p57
    %s60 = sadd.s32 %s59, 1
    %p63 = scmp.eq.s32.totalorder %s11, 1
    %p64 = scmp.ne.s32.totalorder %s59, %s61
    %p65 = scmp.eq.s32.totalorder %s11, 0
    %p66 = por %p64, %p65
    %p67 = scmp.ne.s32.totalorder %s59, %s61
    %p68 = scmp.eq.s32.totalorder %s16, 1
    %p69 = por %p67, %p68
    %p70 = scmp.ne.s32.totalorder %s61, %s62
    %p71 = scmp.eq.s32.totalorder %s16, 0
    %p72 = por %p70, %p71
    %p73 = scmp.ne.s32.totalorder %s61, %s62
    %p74 = scmp.eq.s32.totalorder %s17, 1
    %p75 = por %p73, %p74
    %p77 = scmp.ne.s32.totalorder %s62, %s76
    %p78 = scmp.eq.s32.totalorder %s17, 0
    %p79 = por %p77, %p78
    %s81 = sadd.s32 %s80, 1
    %p84 = scmp.eq.s32.totalorder %s11, 1
    %p85 = scmp.ne.s32.totalorder %s80, %s82
    %p86 = scmp.eq.s32.totalorder %s11, 0
    %p87 = por %p85, %p86
    %p88 = scmp.ne.s32.totalorder %s80, %s82
    %p89 = scmp.eq.s32.totalorder %s16, 1
    %p90 = por %p88, %p89
    %p91 = scmp.ne.s32.totalorder %s82, %s83
    %p92 = scmp.eq.s32.totalorder %s16, 0
    %p93 = por %p91, %p92
    %p94 = scmp.ne.s32.totalorder %s82, %s83
    %p95 = scmp.eq.s32.totalorder %s17, 1
    %p96 = por %p94, %p95
    %p98 = scmp.ne.s32.totalorder %s83, %s97
    %p99 = scmp.eq.s32.totalorder %s17, 0
    %p100 = por %p98, %p99
    %s101 = ssub.s32 %s18, %s30
    %s102 = ssub.s32 %s19, %s26
    %s103 = sor.u32 %s101, %s102
    %p104 = scmp.eq.s32.totalorder %s103, 0
    %s106 = sadd.s32 %s105, 1
    %s107 = scalar_select %p104, %s105, %s106
    %p110 = pneg %p104
    %p111 = scmp.eq.s32.totalorder %s11, 1
    %p112 = por %p110, %p111
    %p113 = scmp.ne.s32.totalorder %s105, %s108
    %p114 = scmp.eq.s32.totalorder %s11, 0
    %p115 = por %p113, %p114
    %p116 = scmp.ne.s32.totalorder %s105, %s108
    %p117 = scmp.eq.s32.totalorder %s16, 1
    %p118 = por %p116, %p117
    %p119 = scmp.ne.s32.totalorder %s108, %s109
    %p120 = scmp.eq.s32.totalorder %s16, 0
    %p121 = por %p119, %p120
    %p122 = scmp.ne.s32.totalorder %s108, %s109
    %p123 = scmp.eq.s32.totalorder %s17, 1
    %p124 = por %p122, %p123
    %p126 = scmp.ne.s32.totalorder %s109, %s125
    %p127 = scmp.eq.s32.totalorder %s17, 0
    %p128 = por %p126, %p127
    %s129 = ssub.s32 %s18, %s30
    %s130 = ssub.s32 %s19, %s26
    %s131 = sor.u32 %s129, %s130
    %p132 = scmp.eq.s32.totalorder %s131, 0
    %s134 = sadd.s32 %s133, 1
    %s135 = scalar_select %p132, %s133, %s134
    %p138 = pneg %p132
    %p139 = scmp.eq.s32.totalorder %s11, 1
    %p140 = por %p138, %p139
    %p141 = scmp.ne.s32.totalorder %s133, %s136
    %p142 = scmp.eq.s32.totalorder %s11, 0
    %p143 = por %p141, %p142
    %p144 = scmp.ne.s32.totalorder %s133, %s136
    %p145 = scmp.eq.s32.totalorder %s16, 1
    %p146 = por %p144, %p145
    %p147 = scmp.ne.s32.totalorder %s136, %s137
    %p148 = scmp.eq.s32.totalorder %s16, 0
    %p149 = por %p147, %p148
    %p150 = scmp.ne.s32.totalorder %s136, %s137
    %p151 = scmp.eq.s32.totalorder %s17, 1
    %p152 = por %p150, %p151
    %p154 = scmp.ne.s32.totalorder %s137, %s153
    %p155 = scmp.eq.s32.totalorder %s17, 0
    %p156 = por %p154, %p155
    %p157 = scmp.le.s32.totalorder 1, %s11
    %p158 = scmp.lt.s32.totalorder %s11, 3
    %p159 = pnand %p157, %p158
    %p160 = pneg %p159
    // Predicated region
    $region9: #{tpu_custom_call.1} parent=5 // pred_check
      _
    $region10: #{tpu_custom_call.1} parent=5 // pred_check_branch
      %162 = sbr.rel (%p159) target = $region12
    $region11: #{tpu_custom_call.1} parent=5 // pred_region
      %s163 = ssub.s32 %s11, 1
      // Predicated region
      $region13: #{tpu_custom_call.1} parent=11 // pred_check
        %p164 = pneg %p72
      $region14: #{tpu_custom_call.1} parent=11 // pred_check_branch
        %166 = sbr.rel (%p164) target = $region16
      $region15: #{tpu_custom_call.1} parent=11 // pred_region
        _
      $region16: #{tpu_custom_call.1} parent=11 // pred_fallthru
        _
      // Predicated region
      $region17: #{tpu_custom_call.1} parent=11 // pred_check
        %p167 = pneg %p93
      $region18: #{tpu_custom_call.1} parent=11 // pred_check_branch
        %169 = sbr.rel (%p167) target = $region20
      $region19: #{tpu_custom_call.1} parent=11 // pred_region
        _
      $region20: #{tpu_custom_call.1} parent=11 // pred_fallthru
        _
    $region12: #{tpu_custom_call.1} parent=5 // pred_fallthru
      _
    %p170 = scmp.lt.s32.totalorder %s11, 2
    // Predicated region
    $region21: #{tpu_custom_call.1} parent=5 // pred_check
      %p171 = pneg %p170
    $region22: #{tpu_custom_call.1} parent=5 // pred_check_branch
      %173 = sbr.rel (%p171) target = $region24
    $region23: #{tpu_custom_call.1} parent=5 // pred_region
      // Predicated region
      $region25: #{tpu_custom_call.1} parent=23 // pred_check
        %p174 = pneg %p45
      $region26: #{tpu_custom_call.1} parent=23 // pred_check_branch
        %176 = sbr.rel (%p174) target = $region28
      $region27: #{tpu_custom_call.1} parent=23 // pred_region
        %s177 = smul.u32 32, %s19
        %p178 = scmp.lt.s32.totalorder %s18, 1
        %s179 = scalar_select %p178, %s18, 1
        %p180 = scmp.lt.s32.totalorder %s177, 31
        %s181 = scalar_select %p180, %s177, 31
        %s182 = smul.addr %s179, 32
        %s183 = sadd.s32 %s181, %s182
        %s184 = smul.addr %s183, 8
        %s185 = scalar_lea.vmem %s0, %s184
        %s186 = smul.u32 32, %s19
      $region28: #{tpu_custom_call.1} parent=23 // pred_fallthru
        _
    $region24: #{tpu_custom_call.1} parent=5 // pred_fallthru
      _
    %p187 = scmp.le.s32.totalorder 1, %s11
    %p188 = scmp.lt.s32.totalorder %s11, 3
    %p189 = pnand %p187, %p188
    %p190 = pneg %p189
    // Predicated region
    $region29: #{tpu_custom_call.1} parent=5 // pred_check
      _
    $region30: #{tpu_custom_call.1} parent=5 // pred_check_branch
      %192 = sbr.rel (%p189) target = $region32
    $region31: #{tpu_custom_call.1} parent=5 // pred_region
      %s193 = ssub.s32 %s11, 1
      %s194 = smul.u32 32, %s21
      %p195 = scmp.lt.s32.totalorder %s20, 1
      %s196 = scalar_select %p195, %s20, 1
      %p197 = scmp.lt.s32.totalorder %s194, 31
      %s198 = scalar_select %p197, %s194, 31
      %s199 = smul.addr %s196, 32
      %s200 = sadd.s32 %s198, %s199
      %s201 = smul.addr %s200, 8
      %s202 = scalar_lea.vmem %s0, %s201
      %p203 = pneg %p51
      %p204 = pneg %p48
      %p205 = pneg %p72
      %p206 = pneg %p69
      %p207 = pneg %p93
      %p208 = pneg %p90
      %p209 = pneg %p121
      %p210 = pneg %p118
      %s211 = smul.u32 32, %s21
      %p212 = scmp.lt.s32.totalorder %s20, 1
      %s213 = scalar_select %p212, %s20, 1
      %p214 = scmp.lt.s32.totalorder %s211, 31
      %s215 = scalar_select %p214, %s211, 31
      %s216 = smul.addr %s213, 32
      %s217 = sadd.s32 %s215, %s216
      %s218 = smul.addr %s217, 8
      %s219 = scalar_lea.vmem %s3, %s218
      %p220 = pneg %p149
      %p221 = pneg %p146
      %s222 = smul.u32 32, %s21
      %p223 = scmp.lt.s32.totalorder %s20, 1
      %s224 = scalar_select %p223, %s20, 1
      %p225 = scmp.lt.s32.totalorder %s222, 31
      %s226 = scalar_select %p225, %s222, 31
      %s227 = smul.addr %s224, 32
      %s228 = sadd.s32 %s226, %s227
      %s229 = smul.addr %s228, 8
      %s230 = scalar_lea.vmem %s4, %s229
      %s231 = smul.u32 32, %s21
      %p232 = scmp.lt.s32.totalorder %s20, 1
      %s233 = scalar_select %p232, %s20, 1
      %p234 = scmp.lt.s32.totalorder %s231, 31
      %s235 = scalar_select %p234, %s231, 31
      %s236 = smul.addr %s233, 32
      %s237 = sadd.s32 %s235, %s236
      %s238 = smul.addr %s237, 8
      %s239 = scalar_lea.vmem %s0, %s238
      %s240 = smul.u32 32, %s21
      %s241 = smul.u32 32, %s21
      %p242 = scmp.lt.s32.totalorder %s20, 1
      %s243 = scalar_select %p242, %s20, 1
      %p244 = scmp.lt.s32.totalorder %s241, 31
      %s245 = scalar_select %p244, %s241, 31
      %s246 = smul.addr %s243, 32
      %s247 = sadd.s32 %s245, %s246
      %s248 = smul.addr %s247, 8
      %s249 = scalar_lea.vmem %s3, %s248
      %s250 = smul.u32 32, %s21
      %s251 = smul.u32 32, %s21
      %p252 = scmp.lt.s32.totalorder %s20, 1
      %s253 = scalar_select %p252, %s20, 1
      %p254 = scmp.lt.s32.totalorder %s251, 31
      %s255 = scalar_select %p254, %s251, 31
      %s256 = smul.addr %s253, 32
      %s257 = sadd.s32 %s255, %s256
      %s258 = smul.addr %s257, 8
      %s259 = scalar_lea.vmem %s4, %s258
      %s260 = smul.u32 32, %s21
      %v261 = vld [vmem:[%s239] sm:$0xff]
      %v262 = vld [vmem:[%s239 + $0x8] sm:$0xff]
      %v263 = vld [vmem:[%s239 + $0x10] sm:$0xff]
      %v264 = vld [vmem:[%s239 + $0x18] sm:$0xff]
      %v265 = vld [vmem:[%s239 + $0x20] sm:$0xff]
      %v266 = vld [vmem:[%s239 + $0x28] sm:$0xff]
      %v267 = vld [vmem:[%s239 + $0x30] sm:$0xff]
      %v268 = vld [vmem:[%s239 + $0x38] sm:$0xff]
      %v269 = vld [vmem:[%s239 + $0x40] sm:$0xff]
      %v270 = vld [vmem:[%s239 + $0x48] sm:$0xff]
      %v271 = vld [vmem:[%s239 + $0x50] sm:$0xff]
      %v272 = vld [vmem:[%s239 + $0x58] sm:$0xff]
      %v273 = vld [vmem:[%s239 + $0x60] sm:$0xff]
      %v274 = vld [vmem:[%s239 + $0x68] sm:$0xff]
      %v275 = vld [vmem:[%s239 + $0x70] sm:$0xff]
      %v276 = vld [vmem:[%s239 + $0x78] sm:$0xff]
      %v277 = vld [vmem:[%s239 + $0x80] sm:$0xff]
      %v278 = vld [vmem:[%s239 + $0x88] sm:$0xff]
      %v279 = vld [vmem:[%s239 + $0x90] sm:$0xff]
      %v280 = vld [vmem:[%s239 + $0x98] sm:$0xff]
      %v281 = vld [vmem:[%s239 + $0xa0] sm:$0xff]
      %v282 = vld [vmem:[%s239 + $0xa8] sm:$0xff]
      %v283 = vld [vmem:[%s239 + $0xb0] sm:$0xff]
      %v284 = vld [vmem:[%s239 + $0xb8] sm:$0xff]
      %v285 = vld [vmem:[%s239 + $0xc0] sm:$0xff]
      %v286 = vld [vmem:[%s239 + $0xc8] sm:$0xff]
      %v287 = vld [vmem:[%s239 + $0xd0] sm:$0xff]
      %v288 = vld [vmem:[%s239 + $0xd8] sm:$0xff]
      %v289 = vld [vmem:[%s239 + $0xe0] sm:$0xff]
      %v290 = vld [vmem:[%s239 + $0xe8] sm:$0xff]
      %v291 = vld [vmem:[%s239 + $0xf0] sm:$0xff]
      %v292 = vld [vmem:[%s239 + $0xf8] sm:$0xff]
      %v293 = vld [vmem:[%s1] sm:$0xff]
      %v294 = vld [vmem:[%s1 + $0x8] sm:$0xff]
      %v295 = vld [vmem:[%s1 + $0x10] sm:$0xff]
      %v296 = vld [vmem:[%s1 + $0x18] sm:$0xff]
      %vm297 = vcmask 261120
      %v299 = vsel %vm297, %v261, 0
      %v302 = vsel %vm297, %v262, 0
      %v305 = vsel %vm297, %v263, 0
      %v308 = vsel %vm297, %v264, 0
      %v311 = vsel %vm297, %v265, 0
      %v314 = vsel %vm297, %v266, 0
      %v317 = vsel %vm297, %v267, 0
      %v320 = vsel %vm297, %v268, 0
      %v323 = vsel %vm297, %v269, 0
      %v326 = vsel %vm297, %v270, 0
      %v329 = vsel %vm297, %v271, 0
      %v332 = vsel %vm297, %v272, 0
      %v335 = vsel %vm297, %v273, 0
      %v338 = vsel %vm297, %v274, 0
      %v341 = vsel %vm297, %v275, 0
      %v344 = vsel %vm297, %v276, 0
      %v347 = vsel %vm297, %v277, 0
      %v350 = vsel %vm297, %v278, 0
      %v353 = vsel %vm297, %v279, 0
      %v356 = vsel %vm297, %v280, 0
      %v359 = vsel %vm297, %v281, 0
      %v362 = vsel %vm297, %v282, 0
      %v365 = vsel %vm297, %v283, 0
      %v368 = vsel %vm297, %v284, 0
      %v371 = vsel %vm297, %v285, 0
      %v374 = vsel %vm297, %v286, 0
      %v377 = vsel %vm297, %v287, 0
      %v380 = vsel %vm297, %v288, 0
      %v383 = vsel %vm297, %v289, 0
      %v386 = vsel %vm297, %v290, 0
      %v389 = vsel %vm297, %v291, 0
      %v392 = vsel %vm297, %v292, 0
      %394 = vmatpush.msra.mxu0 0.0
      %395 = vmatpush.msra.mxu0 0.0
      %396 = vmatpush.msra.mxu0 0.0
      %397 = vmatpush.msra.mxu0 0.0
      %398 = vmatpush.msra.mxu0 0.0
      %399 = vmatpush.msra.mxu0 0.0
      %400 = vmatpush.msra.mxu0 0.0
      %401 = vmatpush.msra.mxu0 0.0
      %402 = vmatpush.msra.mxu0 0.0
      %403 = vmatpush.msra.mxu0 0.0
      %404 = vmatpush.msra.mxu0 0.0
      %405 = vmatpush.msra.mxu0 0.0
      %406 = vmatpush.msra.mxu0 %v296
      %407 = vmatpush.msra.mxu0 %v295
      %408 = vmatpush.msra.mxu0 %v294
      %409 = vmatpush.msra.mxu0 %v293
      %410 = vmatmul.f32.gmra.mxu0 %v299
      %v411 = vpop.f32.mrf.mxu0
      %v412 = vadd.f32 0.0, %v411
      %413 = vmatmul.f32.gmra.mxu0 %v302
      %v414 = vpop.f32.mrf.mxu0
      %v415 = vadd.f32 0.0, %v414
      %416 = vmatmul.f32.gmra.mxu0 %v305
      %v417 = vpop.f32.mrf.mxu0
      %v418 = vadd.f32 0.0, %v417
      %419 = vmatmul.f32.gmra.mxu0 %v308
      %v420 = vpop.f32.mrf.mxu0
      %v421 = vadd.f32 0.0, %v420
      %422 = vmatmul.f32.gmra.mxu0 %v311
      %v423 = vpop.f32.mrf.mxu0
      %v424 = vadd.f32 0.0, %v423
      %425 = vmatmul.f32.gmra.mxu0 %v314
      %v426 = vpop.f32.mrf.mxu0
      %v427 = vadd.f32 0.0, %v426
      %428 = vmatmul.f32.gmra.mxu0 %v317
      %v429 = vpop.f32.mrf.mxu0
      %v430 = vadd.f32 0.0, %v429
      %431 = vmatmul.f32.gmra.mxu0 %v320
      %v432 = vpop.f32.mrf.mxu0
      %v433 = vadd.f32 0.0, %v432
      %434 = vmatmul.f32.gmra.mxu0 %v323
      %v435 = vpop.f32.mrf.mxu0
      %v436 = vadd.f32 0.0, %v435
      %437 = vmatmul.f32.gmra.mxu0 %v326
      %v438 = vpop.f32.mrf.mxu0
      %v439 = vadd.f32 0.0, %v438
      %440 = vmatmul.f32.gmra.mxu0 %v329
      %v441 = vpop.f32.mrf.mxu0
      %v442 = vadd.f32 0.0, %v441
      %443 = vmatmul.f32.gmra.mxu0 %v332
      %v444 = vpop.f32.mrf.mxu0
      %v445 = vadd.f32 0.0, %v444
      %446 = vmatmul.f32.gmra.mxu0 %v335
      %v447 = vpop.f32.mrf.mxu0
      %v448 = vadd.f32 0.0, %v447
      %449 = vmatmul.f32.gmra.mxu0 %v338
      %v450 = vpop.f32.mrf.mxu0
      %v451 = vadd.f32 0.0, %v450
      %452 = vmatmul.f32.gmra.mxu0 %v341
      %v453 = vpop.f32.mrf.mxu0
      %v454 = vadd.f32 0.0, %v453
      %455 = vmatmul.f32.gmra.mxu0 %v344
      %v456 = vpop.f32.mrf.mxu0
      %v457 = vadd.f32 0.0, %v456
      %458 = vmatmul.f32.gmra.mxu0 %v347
      %v459 = vpop.f32.mrf.mxu0
      %v460 = vadd.f32 0.0, %v459
      %461 = vmatmul.f32.gmra.mxu0 %v350
      %v462 = vpop.f32.mrf.mxu0
      %v463 = vadd.f32 0.0, %v462
      %464 = vmatmul.f32.gmra.mxu0 %v353
      %v465 = vpop.f32.mrf.mxu0
      %v466 = vadd.f32 0.0, %v465
      %467 = vmatmul.f32.gmra.mxu0 %v356
      %v468 = vpop.f32.mrf.mxu0
      %v469 = vadd.f32 0.0, %v468
      %470 = vmatmul.f32.gmra.mxu0 %v359
      %v471 = vpop.f32.mrf.mxu0
      %v472 = vadd.f32 0.0, %v471
      %473 = vmatmul.f32.gmra.mxu0 %v362
      %v474 = vpop.f32.mrf.mxu0
      %v475 = vadd.f32 0.0, %v474
      %476 = vmatmul.f32.gmra.mxu0 %v365
      %v477 = vpop.f32.mrf.mxu0
      %v478 = vadd.f32 0.0, %v477
      %479 = vmatmul.f32.gmra.mxu0 %v368
      %v480 = vpop.f32.mrf.mxu0
      %v481 = vadd.f32 0.0, %v480
      %482 = vmatmul.f32.gmra.mxu0 %v371
      %v483 = vpop.f32.mrf.mxu0
      %v484 = vadd.f32 0.0, %v483
      %485 = vmatmul.f32.gmra.mxu0 %v374
      %v486 = vpop.f32.mrf.mxu0
      %v487 = vadd.f32 0.0, %v486
      %488 = vmatmul.f32.gmra.mxu0 %v377
      %v489 = vpop.f32.mrf.mxu0
      %v490 = vadd.f32 0.0, %v489
      %491 = vmatmul.f32.gmra.mxu0 %v380
      %v492 = vpop.f32.mrf.mxu0
      %v493 = vadd.f32 0.0, %v492
      %494 = vmatmul.f32.gmra.mxu0 %v383
      %v495 = vpop.f32.mrf.mxu0
      %v496 = vadd.f32 0.0, %v495
      %497 = vmatmul.f32.gmra.mxu0 %v386
      %v498 = vpop.f32.mrf.mxu0
      %v499 = vadd.f32 0.0, %v498
      %500 = vmatmul.f32.gmra.mxu0 %v389
      %v501 = vpop.f32.mrf.mxu0
      %v502 = vadd.f32 0.0, %v501
      %503 = vmatmul.f32.gmra.mxu0 %v392
      %v504 = vpop.f32.mrf.mxu0
      %v505 = vadd.f32 0.0, %v504
      %506 = vdwg.mxu0
      %v507 = vld [vmem:[%s2] sm:$0xff]
      %v508 = vld [vmem:[%s2 + $0x8] sm:$0xff]
      %v509 = vld [vmem:[%s2 + $0x10] sm:$0xff]
      %v510 = vld [vmem:[%s2 + $0x18] sm:$0xff]
      %511 = vmatpush.msra.mxu0 0.0
      %512 = vmatpush.msra.mxu0 0.0
      %513 = vmatpush.msra.mxu0 0.0
      %514 = vmatpush.msra.mxu0 0.0
      %515 = vmatpush.msra.mxu0 0.0
      %516 = vmatpush.msra.mxu0 0.0
      %517 = vmatpush.msra.mxu0 0.0
      %518 = vmatpush.msra.mxu0 0.0
      %519 = vmatpush.msra.mxu0 0.0
      %520 = vmatpush.msra.mxu0 0.0
      %521 = vmatpush.msra.mxu0 0.0
      %522 = vmatpush.msra.mxu0 0.0
      %523 = vmatpush.msra.mxu0 %v510
      %524 = vmatpush.msra.mxu0 %v509
      %525 = vmatpush.msra.mxu0 %v508
      %526 = vmatpush.msra.mxu0 %v507
      %527 = vmatmul.f32.gmra.mxu0 %v299
      %v528 = vpop.f32.mrf.mxu0
      %v529 = vadd.f32 0.0, %v528
      %530 = vmatmul.f32.gmra.mxu0 %v302
      %v531 = vpop.f32.mrf.mxu0
      %v532 = vadd.f32 0.0, %v531
      %533 = vmatmul.f32.gmra.mxu0 %v305
      %v534 = vpop.f32.mrf.mxu0
      %v535 = vadd.f32 0.0, %v534
      %536 = vmatmul.f32.gmra.mxu0 %v308
      %v537 = vpop.f32.mrf.mxu0
      %v538 = vadd.f32 0.0, %v537
      %539 = vmatmul.f32.gmra.mxu0 %v311
      %v540 = vpop.f32.mrf.mxu0
      %v541 = vadd.f32 0.0, %v540
      %542 = vmatmul.f32.gmra.mxu0 %v314
      %v543 = vpop.f32.mrf.mxu0
      %v544 = vadd.f32 0.0, %v543
      %545 = vmatmul.f32.gmra.mxu0 %v317
      %v546 = vpop.f32.mrf.mxu0
      %v547 = vadd.f32 0.0, %v546
      %548 = vmatmul.f32.gmra.mxu0 %v320
      %v549 = vpop.f32.mrf.mxu0
      %v550 = vadd.f32 0.0, %v549
      %551 = vmatmul.f32.gmra.mxu0 %v323
      %v552 = vpop.f32.mrf.mxu0
      %v553 = vadd.f32 0.0, %v552
      %554 = vmatmul.f32.gmra.mxu0 %v326
      %v555 = vpop.f32.mrf.mxu0
      %v556 = vadd.f32 0.0, %v555
      %557 = vmatmul.f32.gmra.mxu0 %v329
      %v558 = vpop.f32.mrf.mxu0
      %v559 = vadd.f32 0.0, %v558
      %560 = vmatmul.f32.gmra.mxu0 %v332
      %v561 = vpop.f32.mrf.mxu0
      %v562 = vadd.f32 0.0, %v561
      %563 = vmatmul.f32.gmra.mxu0 %v335
      %v564 = vpop.f32.mrf.mxu0
      %v565 = vadd.f32 0.0, %v564
      %566 = vmatmul.f32.gmra.mxu0 %v338
      %v567 = vpop.f32.mrf.mxu0
      %v568 = vadd.f32 0.0, %v567
      %569 = vmatmul.f32.gmra.mxu0 %v341
      %v570 = vpop.f32.mrf.mxu0
      %v571 = vadd.f32 0.0, %v570
      %572 = vmatmul.f32.gmra.mxu0 %v344
      %v573 = vpop.f32.mrf.mxu0
      %v574 = vadd.f32 0.0, %v573
      %575 = vmatmul.f32.gmra.mxu0 %v347
      %v576 = vpop.f32.mrf.mxu0
      %v577 = vadd.f32 0.0, %v576
      %578 = vmatmul.f32.gmra.mxu0 %v350
      %v579 = vpop.f32.mrf.mxu0
      %v580 = vadd.f32 0.0, %v579
      %581 = vmatmul.f32.gmra.mxu0 %v353
      %v582 = vpop.f32.mrf.mxu0
      %v583 = vadd.f32 0.0, %v582
      %584 = vmatmul.f32.gmra.mxu0 %v356
      %v585 = vpop.f32.mrf.mxu0
      %v586 = vadd.f32 0.0, %v585
      %587 = vmatmul.f32.gmra.mxu0 %v359
      %v588 = vpop.f32.mrf.mxu0
      %v589 = vadd.f32 0.0, %v588
      %590 = vmatmul.f32.gmra.mxu0 %v362
      %v591 = vpop.f32.mrf.mxu0
      %v592 = vadd.f32 0.0, %v591
      %593 = vmatmul.f32.gmra.mxu0 %v365
      %v594 = vpop.f32.mrf.mxu0
      %v595 = vadd.f32 0.0, %v594
      %596 = vmatmul.f32.gmra.mxu0 %v368
      %v597 = vpop.f32.mrf.mxu0
      %v598 = vadd.f32 0.0, %v597
      %599 = vmatmul.f32.gmra.mxu0 %v371
      %v600 = vpop.f32.mrf.mxu0
      %v601 = vadd.f32 0.0, %v600
      %602 = vmatmul.f32.gmra.mxu0 %v374
      %v603 = vpop.f32.mrf.mxu0
      %v604 = vadd.f32 0.0, %v603
      %605 = vmatmul.f32.gmra.mxu0 %v377
      %v606 = vpop.f32.mrf.mxu0
      %v607 = vadd.f32 0.0, %v606
      %608 = vmatmul.f32.gmra.mxu0 %v380
      %v609 = vpop.f32.mrf.mxu0
      %v610 = vadd.f32 0.0, %v609
      %611 = vmatmul.f32.gmra.mxu0 %v383
      %v612 = vpop.f32.mrf.mxu0
      %v613 = vadd.f32 0.0, %v612
      %614 = vmatmul.f32.gmra.mxu0 %v386
      %v615 = vpop.f32.mrf.mxu0
      %v616 = vadd.f32 0.0, %v615
      %617 = vmatmul.f32.gmra.mxu0 %v389
      %v618 = vpop.f32.mrf.mxu0
      %v619 = vadd.f32 0.0, %v618
      %620 = vmatmul.f32.gmra.mxu0 %v392
      %v621 = vpop.f32.mrf.mxu0
      %v622 = vadd.f32 0.0, %v621
      %623 = vdwg.mxu0
      %v624 = vsub.f32 0.0, %v412
      %v625 = vsub.f32 0.0, %v415
      %v626 = vsub.f32 0.0, %v418
      %v627 = vsub.f32 0.0, %v421
      %v628 = vsub.f32 0.0, %v424
      %v629 = vsub.f32 0.0, %v427
      %v630 = vsub.f32 0.0, %v430
      %v631 = vsub.f32 0.0, %v433
      %v632 = vsub.f32 0.0, %v436
      %v633 = vsub.f32 0.0, %v439
      %v634 = vsub.f32 0.0, %v442
      %v635 = vsub.f32 0.0, %v445
      %v636 = vsub.f32 0.0, %v448
      %v637 = vsub.f32 0.0, %v451
      %v638 = vsub.f32 0.0, %v454
      %v639 = vsub.f32 0.0, %v457
      %v640 = vsub.f32 0.0, %v460
      %v641 = vsub.f32 0.0, %v463
      %v642 = vsub.f32 0.0, %v466
      %v643 = vsub.f32 0.0, %v469
      %v644 = vsub.f32 0.0, %v472
      %v645 = vsub.f32 0.0, %v475
      %v646 = vsub.f32 0.0, %v478
      %v647 = vsub.f32 0.0, %v481
      %v648 = vsub.f32 0.0, %v484
      %v649 = vsub.f32 0.0, %v487
      %v650 = vsub.f32 0.0, %v490
      %v651 = vsub.f32 0.0, %v493
      %v652 = vsub.f32 0.0, %v496
      %v653 = vsub.f32 0.0, %v499
      %v654 = vsub.f32 0.0, %v502
      %v655 = vsub.f32 0.0, %v505
      %v656 = vmul.f32 %v624, 1.442695
      %v657 = vpow.pop %v656
      %v658 = vmul.f32 %v625, 1.442695
      %v659 = vpow.pop %v658
      %v660 = vmul.f32 %v626, 1.442695
      %v661 = vpow.pop %v660
      %v662 = vmul.f32 %v627, 1.442695
      %v663 = vpow.pop %v662
      %v664 = vmul.f32 %v628, 1.442695
      %v665 = vpow.pop %v664
      %v666 = vmul.f32 %v629, 1.442695
      %v667 = vpow.pop %v666
      %v668 = vmul.f32 %v630, 1.442695
      %v669 = vpow.pop %v668
      %v670 = vmul.f32 %v631, 1.442695
      %v671 = vpow.pop %v670
      %v672 = vmul.f32 %v632, 1.442695
      %v673 = vpow.pop %v672
      %v674 = vmul.f32 %v633, 1.442695
      %v675 = vpow.pop %v674
      %v676 = vmul.f32 %v634, 1.442695
      %v677 = vpow.pop %v676
      %v678 = vmul.f32 %v635, 1.442695
      %v679 = vpow.pop %v678
      %v680 = vmul.f32 %v636, 1.442695
      %v681 = vpow.pop %v680
      %v682 = vmul.f32 %v637, 1.442695
      %v683 = vpow.pop %v682
      %v684 = vmul.f32 %v638, 1.442695
      %v685 = vpow.pop %v684
      %v686 = vmul.f32 %v639, 1.442695
      %v687 = vpow.pop %v686
      %v688 = vmul.f32 %v640, 1.442695
      %v689 = vpow.pop %v688
      %v690 = vmul.f32 %v641, 1.442695
      %v691 = vpow.pop %v690
      %v692 = vmul.f32 %v642, 1.442695
      %v693 = vpow.pop %v692
      %v694 = vmul.f32 %v643, 1.442695
      %v695 = vpow.pop %v694
      %v696 = vmul.f32 %v644, 1.442695
      %v697 = vpow.pop %v696
      %v698 = vmul.f32 %v645, 1.442695
      %v699 = vpow.pop %v698
      %v700 = vmul.f32 %v646, 1.442695
      %v701 = vpow.pop %v700
      %v702 = vmul.f32 %v647, 1.442695
      %v703 = vpow.pop %v702
      %v704 = vmul.f32 %v648, 1.442695
      %v705 = vpow.pop %v704
      %v706 = vmul.f32 %v649, 1.442695
      %v707 = vpow.pop %v706
      %v708 = vmul.f32 %v650, 1.442695
      %v709 = vpow.pop %v708
      %v710 = vmul.f32 %v651, 1.442695
      %v711 = vpow.pop %v710
      %v712 = vmul.f32 %v652, 1.442695
      %v713 = vpow.pop %v712
      %v714 = vmul.f32 %v653, 1.442695
      %v715 = vpow.pop %v714
      %v716 = vmul.f32 %v654, 1.442695
      %v717 = vpow.pop %v716
      %v718 = vmul.f32 %v655, 1.442695
      %v719 = vpow.pop %v718
      %v720 = vadd.f32 %v657, 1.0
      %v721 = vadd.f32 %v659, 1.0
      %v722 = vadd.f32 %v661, 1.0
      %v723 = vadd.f32 %v663, 1.0
      %v724 = vadd.f32 %v665, 1.0
      %v725 = vadd.f32 %v667, 1.0
      %v726 = vadd.f32 %v669, 1.0
      %v727 = vadd.f32 %v671, 1.0
      %v728 = vadd.f32 %v673, 1.0
      %v729 = vadd.f32 %v675, 1.0
      %v730 = vadd.f32 %v677, 1.0
      %v731 = vadd.f32 %v679, 1.0
      %v732 = vadd.f32 %v681, 1.0
      %v733 = vadd.f32 %v683, 1.0
      %v734 = vadd.f32 %v685, 1.0
      %v735 = vadd.f32 %v687, 1.0
      %v736 = vadd.f32 %v689, 1.0
      %v737 = vadd.f32 %v691, 1.0
      %v738 = vadd.f32 %v693, 1.0
      %v739 = vadd.f32 %v695, 1.0
      %v740 = vadd.f32 %v697, 1.0
      %v741 = vadd.f32 %v699, 1.0
      %v742 = vadd.f32 %v701, 1.0
      %v743 = vadd.f32 %v703, 1.0
      %v744 = vadd.f32 %v705, 1.0
      %v745 = vadd.f32 %v707, 1.0
      %v746 = vadd.f32 %v709, 1.0
      %v747 = vadd.f32 %v711, 1.0
      %v748 = vadd.f32 %v713, 1.0
      %v749 = vadd.f32 %v715, 1.0
      %v750 = vadd.f32 %v717, 1.0
      %v751 = vadd.f32 %v719, 1.0
      %v752 = vrcp.pop %v720
      %v753 = vmul.f32 %v720, %v752
      %v754 = vsub.f32 1.0, %v753
      %v755 = vmul.f32 %v752, %v754
      %v756 = vadd.f32 %v752, %v755
      %vm757 = vweird.f32 %v720
      %vm758 = vweird.f32 %v752
      %vm759 = vmor %vm757, %vm758
      %v760 = vsel %vm759, %v752, %v756
      %v761 = vand.u32 2147483647, %v720
      %vm762 = vcmp.eq.f32.partialorder %v761, 8.507059e+37
      %v763 = vand.u32 %v720, 2147483648
      %v764 = vor.u32 1.1754944e-38, %v763
      %v765 = vsel %vm762, %v764, %v760
      %v766 = vmul.f32 1.0, %v765
      %v767 = vrcp.pop %v721
      %v768 = vmul.f32 %v721, %v767
      %v769 = vsub.f32 1.0, %v768
      %v770 = vmul.f32 %v767, %v769
      %v771 = vadd.f32 %v767, %v770
      %vm772 = vweird.f32 %v721
      %vm773 = vweird.f32 %v767
      %vm774 = vmor %vm772, %vm773
      %v775 = vsel %vm774, %v767, %v771
      %v776 = vand.u32 2147483647, %v721
      %vm777 = vcmp.eq.f32.partialorder %v776, 8.507059e+37
      %v778 = vand.u32 %v721, 2147483648
      %v779 = vor.u32 1.1754944e-38, %v778
      %v780 = vsel %vm777, %v779, %v775
      %v781 = vmul.f32 1.0, %v780
      %v782 = vrcp.pop %v722
      %v783 = vmul.f32 %v722, %v782
      %v784 = vsub.f32 1.0, %v783
      %v785 = vmul.f32 %v782, %v784
      %v786 = vadd.f32 %v782, %v785
      %vm787 = vweird.f32 %v722
      %vm788 = vweird.f32 %v782
      %vm789 = vmor %vm787, %vm788
      %v790 = vsel %vm789, %v782, %v786
      %v791 = vand.u32 2147483647, %v722
      %vm792 = vcmp.eq.f32.partialorder %v791, 8.507059e+37
      %v793 = vand.u32 %v722, 2147483648
      %v794 = vor.u32 1.1754944e-38, %v793
      %v795 = vsel %vm792, %v794, %v790
      %v796 = vmul.f32 1.0, %v795
      %v797 = vrcp.pop %v723
      %v798 = vmul.f32 %v723, %v797
      %v799 = vsub.f32 1.0, %v798
      %v800 = vmul.f32 %v797, %v799
      %v801 = vadd.f32 %v797, %v800
      %vm802 = vweird.f32 %v723
      %vm803 = vweird.f32 %v797
      %vm804 = vmor %vm802, %vm803
      %v805 = vsel %vm804, %v797, %v801
      %v806 = vand.u32 2147483647, %v723
      %vm807 = vcmp.eq.f32.partialorder %v806, 8.507059e+37
      %v808 = vand.u32 %v723, 2147483648
      %v809 = vor.u32 1.1754944e-38, %v808
      %v810 = vsel %vm807, %v809, %v805
      %v811 = vmul.f32 1.0, %v810
      %v812 = vrcp.pop %v724
      %v813 = vmul.f32 %v724, %v812
      %v814 = vsub.f32 1.0, %v813
      %v815 = vmul.f32 %v812, %v814
      %v816 = vadd.f32 %v812, %v815
      %vm817 = vweird.f32 %v724
      %vm818 = vweird.f32 %v812
      %vm819 = vmor %vm817, %vm818
      %v820 = vsel %vm819, %v812, %v816
      %v821 = vand.u32 2147483647, %v724
      %vm822 = vcmp.eq.f32.partialorder %v821, 8.507059e+37
      %v823 = vand.u32 %v724, 2147483648
      %v824 = vor.u32 1.1754944e-38, %v823
      %v825 = vsel %vm822, %v824, %v820
      %v826 = vmul.f32 1.0, %v825
      %v827 = vrcp.pop %v725
      %v828 = vmul.f32 %v725, %v827
      %v829 = vsub.f32 1.0, %v828
      %v830 = vmul.f32 %v827, %v829
      %v831 = vadd.f32 %v827, %v830
      %vm832 = vweird.f32 %v725
      %vm833 = vweird.f32 %v827
      %vm834 = vmor %vm832, %vm833
      %v835 = vsel %vm834, %v827, %v831
      %v836 = vand.u32 2147483647, %v725
      %vm837 = vcmp.eq.f32.partialorder %v836, 8.507059e+37
      %v838 = vand.u32 %v725, 2147483648
      %v839 = vor.u32 1.1754944e-38, %v838
      %v840 = vsel %vm837, %v839, %v835
      %v841 = vmul.f32 1.0, %v840
      %v842 = vrcp.pop %v726
      %v843 = vmul.f32 %v726, %v842
      %v844 = vsub.f32 1.0, %v843
      %v845 = vmul.f32 %v842, %v844
      %v846 = vadd.f32 %v842, %v845
      %vm847 = vweird.f32 %v726
      %vm848 = vweird.f32 %v842
      %vm849 = vmor %vm847, %vm848
      %v850 = vsel %vm849, %v842, %v846
      %v851 = vand.u32 2147483647, %v726
      %vm852 = vcmp.eq.f32.partialorder %v851, 8.507059e+37
      %v853 = vand.u32 %v726, 2147483648
      %v854 = vor.u32 1.1754944e-38, %v853
      %v855 = vsel %vm852, %v854, %v850
      %v856 = vmul.f32 1.0, %v855
      %v857 = vrcp.pop %v727
      %v858 = vmul.f32 %v727, %v857
      %v859 = vsub.f32 1.0, %v858
      %v860 = vmul.f32 %v857, %v859
      %v861 = vadd.f32 %v857, %v860
      %vm862 = vweird.f32 %v727
      %vm863 = vweird.f32 %v857
      %vm864 = vmor %vm862, %vm863
      %v865 = vsel %vm864, %v857, %v861
      %v866 = vand.u32 2147483647, %v727
      %vm867 = vcmp.eq.f32.partialorder %v866, 8.507059e+37
      %v868 = vand.u32 %v727, 2147483648
      %v869 = vor.u32 1.1754944e-38, %v868
      %v870 = vsel %vm867, %v869, %v865
      %v871 = vmul.f32 1.0, %v870
      %v872 = vrcp.pop %v728
      %v873 = vmul.f32 %v728, %v872
      %v874 = vsub.f32 1.0, %v873
      %v875 = vmul.f32 %v872, %v874
      %v876 = vadd.f32 %v872, %v875
      %vm877 = vweird.f32 %v728
      %vm878 = vweird.f32 %v872
      %vm879 = vmor %vm877, %vm878
      %v880 = vsel %vm879, %v872, %v876
      %v881 = vand.u32 2147483647, %v728
      %vm882 = vcmp.eq.f32.partialorder %v881, 8.507059e+37
      %v883 = vand.u32 %v728, 2147483648
      %v884 = vor.u32 1.1754944e-38, %v883
      %v885 = vsel %vm882, %v884, %v880
      %v886 = vmul.f32 1.0, %v885
      %v887 = vrcp.pop %v729
      %v888 = vmul.f32 %v729, %v887
      %v889 = vsub.f32 1.0, %v888
      %v890 = vmul.f32 %v887, %v889
      %v891 = vadd.f32 %v887, %v890
      %vm892 = vweird.f32 %v729
      %vm893 = vweird.f32 %v887
      %vm894 = vmor %vm892, %vm893
      %v895 = vsel %vm894, %v887, %v891
      %v896 = vand.u32 2147483647, %v729
      %vm897 = vcmp.eq.f32.partialorder %v896, 8.507059e+37
      %v898 = vand.u32 %v729, 2147483648
      %v899 = vor.u32 1.1754944e-38, %v898
      %v900 = vsel %vm897, %v899, %v895
      %v901 = vmul.f32 1.0, %v900
      %v902 = vrcp.pop %v730
      %v903 = vmul.f32 %v730, %v902
      %v904 = vsub.f32 1.0, %v903
      %v905 = vmul.f32 %v902, %v904
      %v906 = vadd.f32 %v902, %v905
      %vm907 = vweird.f32 %v730
      %vm908 = vweird.f32 %v902
      %vm909 = vmor %vm907, %vm908
      %v910 = vsel %vm909, %v902, %v906
      %v911 = vand.u32 2147483647, %v730
      %vm912 = vcmp.eq.f32.partialorder %v911, 8.507059e+37
      %v913 = vand.u32 %v730, 2147483648
      %v914 = vor.u32 1.1754944e-38, %v913
      %v915 = vsel %vm912, %v914, %v910
      %v916 = vmul.f32 1.0, %v915
      %v917 = vrcp.pop %v731
      %v918 = vmul.f32 %v731, %v917
      %v919 = vsub.f32 1.0, %v918
      %v920 = vmul.f32 %v917, %v919
      %v921 = vadd.f32 %v917, %v920
      %vm922 = vweird.f32 %v731
      %vm923 = vweird.f32 %v917
      %vm924 = vmor %vm922, %vm923
      %v925 = vsel %vm924, %v917, %v921
      %v926 = vand.u32 2147483647, %v731
      %vm927 = vcmp.eq.f32.partialorder %v926, 8.507059e+37
      %v928 = vand.u32 %v731, 2147483648
      %v929 = vor.u32 1.1754944e-38, %v928
      %v930 = vsel %vm927, %v929, %v925
      %v931 = vmul.f32 1.0, %v930
      %v932 = vrcp.pop %v732
      %v933 = vmul.f32 %v732, %v932
      %v934 = vsub.f32 1.0, %v933
      %v935 = vmul.f32 %v932, %v934
      %v936 = vadd.f32 %v932, %v935
      %vm937 = vweird.f32 %v732
      %vm938 = vweird.f32 %v932
      %vm939 = vmor %vm937, %vm938
      %v940 = vsel %vm939, %v932, %v936
      %v941 = vand.u32 2147483647, %v732
      %vm942 = vcmp.eq.f32.partialorder %v941, 8.507059e+37
      %v943 = vand.u32 %v732, 2147483648
      %v944 = vor.u32 1.1754944e-38, %v943
      %v945 = vsel %vm942, %v944, %v940
      %v946 = vmul.f32 1.0, %v945
      %v947 = vrcp.pop %v733
      %v948 = vmul.f32 %v733, %v947
      %v949 = vsub.f32 1.0, %v948
      %v950 = vmul.f32 %v947, %v949
      %v951 = vadd.f32 %v947, %v950
      %vm952 = vweird.f32 %v733
      %vm953 = vweird.f32 %v947
      %vm954 = vmor %vm952, %vm953
      %v955 = vsel %vm954, %v947, %v951
      %v956 = vand.u32 2147483647, %v733
      %vm957 = vcmp.eq.f32.partialorder %v956, 8.507059e+37
      %v958 = vand.u32 %v733, 2147483648
      %v959 = vor.u32 1.1754944e-38, %v958
      %v960 = vsel %vm957, %v959, %v955
      %v961 = vmul.f32 1.0, %v960
      %v962 = vrcp.pop %v734
      %v963 = vmul.f32 %v734, %v962
      %v964 = vsub.f32 1.0, %v963
      %v965 = vmul.f32 %v962, %v964
      %v966 = vadd.f32 %v962, %v965
      %vm967 = vweird.f32 %v734
      %vm968 = vweird.f32 %v962
      %vm969 = vmor %vm967, %vm968
      %v970 = vsel %vm969, %v962, %v966
      %v971 = vand.u32 2147483647, %v734
      %vm972 = vcmp.eq.f32.partialorder %v971, 8.507059e+37
      %v973 = vand.u32 %v734, 2147483648
      %v974 = vor.u32 1.1754944e-38, %v973
      %v975 = vsel %vm972, %v974, %v970
      %v976 = vmul.f32 1.0, %v975
      %v977 = vrcp.pop %v735
      %v978 = vmul.f32 %v735, %v977
      %v979 = vsub.f32 1.0, %v978
      %v980 = vmul.f32 %v977, %v979
      %v981 = vadd.f32 %v977, %v980
      %vm982 = vweird.f32 %v735
      %vm983 = vweird.f32 %v977
      %vm984 = vmor %vm982, %vm983
      %v985 = vsel %vm984, %v977, %v981
      %v986 = vand.u32 2147483647, %v735
      %vm987 = vcmp.eq.f32.partialorder %v986, 8.507059e+37
      %v988 = vand.u32 %v735, 2147483648
      %v989 = vor.u32 1.1754944e-38, %v988
      %v990 = vsel %vm987, %v989, %v985
      %v991 = vmul.f32 1.0, %v990
      %v992 = vrcp.pop %v736
      %v993 = vmul.f32 %v736, %v992
      %v994 = vsub.f32 1.0, %v993
      %v995 = vmul.f32 %v992, %v994
      %v996 = vadd.f32 %v992, %v995
      %vm997 = vweird.f32 %v736
      %vm998 = vweird.f32 %v992
      %vm999 = vmor %vm997, %vm998
      %v1000 = vsel %vm999, %v992, %v996
      %v1001 = vand.u32 2147483647, %v736
      %vm1002 = vcmp.eq.f32.partialorder %v1001, 8.507059e+37
      %v1003 = vand.u32 %v736, 2147483648
      %v1004 = vor.u32 1.1754944e-38, %v1003
      %v1005 = vsel %vm1002, %v1004, %v1000
      %v1006 = vmul.f32 1.0, %v1005
      %v1007 = vrcp.pop %v737
      %v1008 = vmul.f32 %v737, %v1007
      %v1009 = vsub.f32 1.0, %v1008
      %v1010 = vmul.f32 %v1007, %v1009
      %v1011 = vadd.f32 %v1007, %v1010
      %vm1012 = vweird.f32 %v737
      %vm1013 = vweird.f32 %v1007
      %vm1014 = vmor %vm1012, %vm1013
      %v1015 = vsel %vm1014, %v1007, %v1011
      %v1016 = vand.u32 2147483647, %v737
      %vm1017 = vcmp.eq.f32.partialorder %v1016, 8.507059e+37
      %v1018 = vand.u32 %v737, 2147483648
      %v1019 = vor.u32 1.1754944e-38, %v1018
      %v1020 = vsel %vm1017, %v1019, %v1015
      %v1021 = vmul.f32 1.0, %v1020
      %v1022 = vrcp.pop %v738
      %v1023 = vmul.f32 %v738, %v1022
      %v1024 = vsub.f32 1.0, %v1023
      %v1025 = vmul.f32 %v1022, %v1024
      %v1026 = vadd.f32 %v1022, %v1025
      %vm1027 = vweird.f32 %v738
      %vm1028 = vweird.f32 %v1022
      %vm1029 = vmor %vm1027, %vm1028
      %v1030 = vsel %vm1029, %v1022, %v1026
      %v1031 = vand.u32 2147483647, %v738
      %vm1032 = vcmp.eq.f32.partialorder %v1031, 8.507059e+37
      %v1033 = vand.u32 %v738, 2147483648
      %v1034 = vor.u32 1.1754944e-38, %v1033
      %v1035 = vsel %vm1032, %v1034, %v1030
      %v1036 = vmul.f32 1.0, %v1035
      %v1037 = vrcp.pop %v739
      %v1038 = vmul.f32 %v739, %v1037
      %v1039 = vsub.f32 1.0, %v1038
      %v1040 = vmul.f32 %v1037, %v1039
      %v1041 = vadd.f32 %v1037, %v1040
      %vm1042 = vweird.f32 %v739
      %vm1043 = vweird.f32 %v1037
      %vm1044 = vmor %vm1042, %vm1043
      %v1045 = vsel %vm1044, %v1037, %v1041
      %v1046 = vand.u32 2147483647, %v739
      %vm1047 = vcmp.eq.f32.partialorder %v1046, 8.507059e+37
      %v1048 = vand.u32 %v739, 2147483648
      %v1049 = vor.u32 1.1754944e-38, %v1048
      %v1050 = vsel %vm1047, %v1049, %v1045
      %v1051 = vmul.f32 1.0, %v1050
      %v1052 = vrcp.pop %v740
      %v1053 = vmul.f32 %v740, %v1052
      %v1054 = vsub.f32 1.0, %v1053
      %v1055 = vmul.f32 %v1052, %v1054
      %v1056 = vadd.f32 %v1052, %v1055
      %vm1057 = vweird.f32 %v740
      %vm1058 = vweird.f32 %v1052
      %vm1059 = vmor %vm1057, %vm1058
      %v1060 = vsel %vm1059, %v1052, %v1056
      %v1061 = vand.u32 2147483647, %v740
      %vm1062 = vcmp.eq.f32.partialorder %v1061, 8.507059e+37
      %v1063 = vand.u32 %v740, 2147483648
      %v1064 = vor.u32 1.1754944e-38, %v1063
      %v1065 = vsel %vm1062, %v1064, %v1060
      %v1066 = vmul.f32 1.0, %v1065
      %v1067 = vrcp.pop %v741
      %v1068 = vmul.f32 %v741, %v1067
      %v1069 = vsub.f32 1.0, %v1068
      %v1070 = vmul.f32 %v1067, %v1069
      %v1071 = vadd.f32 %v1067, %v1070
      %vm1072 = vweird.f32 %v741
      %vm1073 = vweird.f32 %v1067
      %vm1074 = vmor %vm1072, %vm1073
      %v1075 = vsel %vm1074, %v1067, %v1071
      %v1076 = vand.u32 2147483647, %v741
      %vm1077 = vcmp.eq.f32.partialorder %v1076, 8.507059e+37
      %v1078 = vand.u32 %v741, 2147483648
      %v1079 = vor.u32 1.1754944e-38, %v1078
      %v1080 = vsel %vm1077, %v1079, %v1075
      %v1081 = vmul.f32 1.0, %v1080
      %v1082 = vrcp.pop %v742
      %v1083 = vmul.f32 %v742, %v1082
      %v1084 = vsub.f32 1.0, %v1083
      %v1085 = vmul.f32 %v1082, %v1084
      %v1086 = vadd.f32 %v1082, %v1085
      %vm1087 = vweird.f32 %v742
      %vm1088 = vweird.f32 %v1082
      %vm1089 = vmor %vm1087, %vm1088
      %v1090 = vsel %vm1089, %v1082, %v1086
      %v1091 = vand.u32 2147483647, %v742
      %vm1092 = vcmp.eq.f32.partialorder %v1091, 8.507059e+37
      %v1093 = vand.u32 %v742, 2147483648
      %v1094 = vor.u32 1.1754944e-38, %v1093
      %v1095 = vsel %vm1092, %v1094, %v1090
      %v1096 = vmul.f32 1.0, %v1095
      %v1097 = vrcp.pop %v743
      %v1098 = vmul.f32 %v743, %v1097
      %v1099 = vsub.f32 1.0, %v1098
      %v1100 = vmul.f32 %v1097, %v1099
      %v1101 = vadd.f32 %v1097, %v1100
      %vm1102 = vweird.f32 %v743
      %vm1103 = vweird.f32 %v1097
      %vm1104 = vmor %vm1102, %vm1103
      %v1105 = vsel %vm1104, %v1097, %v1101
      %v1106 = vand.u32 2147483647, %v743
      %vm1107 = vcmp.eq.f32.partialorder %v1106, 8.507059e+37
      %v1108 = vand.u32 %v743, 2147483648
      %v1109 = vor.u32 1.1754944e-38, %v1108
      %v1110 = vsel %vm1107, %v1109, %v1105
      %v1111 = vmul.f32 1.0, %v1110
      %v1112 = vrcp.pop %v744
      %v1113 = vmul.f32 %v744, %v1112
      %v1114 = vsub.f32 1.0, %v1113
      %v1115 = vmul.f32 %v1112, %v1114
      %v1116 = vadd.f32 %v1112, %v1115
      %vm1117 = vweird.f32 %v744
      %vm1118 = vweird.f32 %v1112
      %vm1119 = vmor %vm1117, %vm1118
      %v1120 = vsel %vm1119, %v1112, %v1116
      %v1121 = vand.u32 2147483647, %v744
      %vm1122 = vcmp.eq.f32.partialorder %v1121, 8.507059e+37
      %v1123 = vand.u32 %v744, 2147483648
      %v1124 = vor.u32 1.1754944e-38, %v1123
      %v1125 = vsel %vm1122, %v1124, %v1120
      %v1126 = vmul.f32 1.0, %v1125
      %v1127 = vrcp.pop %v745
      %v1128 = vmul.f32 %v745, %v1127
      %v1129 = vsub.f32 1.0, %v1128
      %v1130 = vmul.f32 %v1127, %v1129
      %v1131 = vadd.f32 %v1127, %v1130
      %vm1132 = vweird.f32 %v745
      %vm1133 = vweird.f32 %v1127
      %vm1134 = vmor %vm1132, %vm1133
      %v1135 = vsel %vm1134, %v1127, %v1131
      %v1136 = vand.u32 2147483647, %v745
      %vm1137 = vcmp.eq.f32.partialorder %v1136, 8.507059e+37
      %v1138 = vand.u32 %v745, 2147483648
      %v1139 = vor.u32 1.1754944e-38, %v1138
      %v1140 = vsel %vm1137, %v1139, %v1135
      %v1141 = vmul.f32 1.0, %v1140
      %v1142 = vrcp.pop %v746
      %v1143 = vmul.f32 %v746, %v1142
      %v1144 = vsub.f32 1.0, %v1143
      %v1145 = vmul.f32 %v1142, %v1144
      %v1146 = vadd.f32 %v1142, %v1145
      %vm1147 = vweird.f32 %v746
      %vm1148 = vweird.f32 %v1142
      %vm1149 = vmor %vm1147, %vm1148
      %v1150 = vsel %vm1149, %v1142, %v1146
      %v1151 = vand.u32 2147483647, %v746
      %vm1152 = vcmp.eq.f32.partialorder %v1151, 8.507059e+37
      %v1153 = vand.u32 %v746, 2147483648
      %v1154 = vor.u32 1.1754944e-38, %v1153
      %v1155 = vsel %vm1152, %v1154, %v1150
      %v1156 = vmul.f32 1.0, %v1155
      %v1157 = vrcp.pop %v747
      %v1158 = vmul.f32 %v747, %v1157
      %v1159 = vsub.f32 1.0, %v1158
      %v1160 = vmul.f32 %v1157, %v1159
      %v1161 = vadd.f32 %v1157, %v1160
      %vm1162 = vweird.f32 %v747
      %vm1163 = vweird.f32 %v1157
      %vm1164 = vmor %vm1162, %vm1163
      %v1165 = vsel %vm1164, %v1157, %v1161
      %v1166 = vand.u32 2147483647, %v747
      %vm1167 = vcmp.eq.f32.partialorder %v1166, 8.507059e+37
      %v1168 = vand.u32 %v747, 2147483648
      %v1169 = vor.u32 1.1754944e-38, %v1168
      %v1170 = vsel %vm1167, %v1169, %v1165
      %v1171 = vmul.f32 1.0, %v1170
      %v1172 = vrcp.pop %v748
      %v1173 = vmul.f32 %v748, %v1172
      %v1174 = vsub.f32 1.0, %v1173
      %v1175 = vmul.f32 %v1172, %v1174
      %v1176 = vadd.f32 %v1172, %v1175
      %vm1177 = vweird.f32 %v748
      %vm1178 = vweird.f32 %v1172
      %vm1179 = vmor %vm1177, %vm1178
      %v1180 = vsel %vm1179, %v1172, %v1176
      %v1181 = vand.u32 2147483647, %v748
      %vm1182 = vcmp.eq.f32.partialorder %v1181, 8.507059e+37
      %v1183 = vand.u32 %v748, 2147483648
      %v1184 = vor.u32 1.1754944e-38, %v1183
      %v1185 = vsel %vm1182, %v1184, %v1180
      %v1186 = vmul.f32 1.0, %v1185
      %v1187 = vrcp.pop %v749
      %v1188 = vmul.f32 %v749, %v1187
      %v1189 = vsub.f32 1.0, %v1188
      %v1190 = vmul.f32 %v1187, %v1189
      %v1191 = vadd.f32 %v1187, %v1190
      %vm1192 = vweird.f32 %v749
      %vm1193 = vweird.f32 %v1187
      %vm1194 = vmor %vm1192, %vm1193
      %v1195 = vsel %vm1194, %v1187, %v1191
      %v1196 = vand.u32 2147483647, %v749
      %vm1197 = vcmp.eq.f32.partialorder %v1196, 8.507059e+37
      %v1198 = vand.u32 %v749, 2147483648
      %v1199 = vor.u32 1.1754944e-38, %v1198
      %v1200 = vsel %vm1197, %v1199, %v1195
      %v1201 = vmul.f32 1.0, %v1200
      %v1202 = vrcp.pop %v750
      %v1203 = vmul.f32 %v750, %v1202
      %v1204 = vsub.f32 1.0, %v1203
      %v1205 = vmul.f32 %v1202, %v1204
      %v1206 = vadd.f32 %v1202, %v1205
      %vm1207 = vweird.f32 %v750
      %vm1208 = vweird.f32 %v1202
      %vm1209 = vmor %vm1207, %vm1208
      %v1210 = vsel %vm1209, %v1202, %v1206
      %v1211 = vand.u32 2147483647, %v750
      %vm1212 = vcmp.eq.f32.partialorder %v1211, 8.507059e+37
      %v1213 = vand.u32 %v750, 2147483648
      %v1214 = vor.u32 1.1754944e-38, %v1213
      %v1215 = vsel %vm1212, %v1214, %v1210
      %v1216 = vmul.f32 1.0, %v1215
      %v1217 = vrcp.pop %v751
      %v1218 = vmul.f32 %v751, %v1217
      %v1219 = vsub.f32 1.0, %v1218
      %v1220 = vmul.f32 %v1217, %v1219
      %v1221 = vadd.f32 %v1217, %v1220
      %vm1222 = vweird.f32 %v751
      %vm1223 = vweird.f32 %v1217
      %vm1224 = vmor %vm1222, %vm1223
      %v1225 = vsel %vm1224, %v1217, %v1221
      %v1226 = vand.u32 2147483647, %v751
      %vm1227 = vcmp.eq.f32.partialorder %v1226, 8.507059e+37
      %v1228 = vand.u32 %v751, 2147483648
      %v1229 = vor.u32 1.1754944e-38, %v1228
      %v1230 = vsel %vm1227, %v1229, %v1225
      %v1231 = vmul.f32 1.0, %v1230
      %v1232 = vmul.f32 %v412, %v766
      %v1233 = vmul.f32 %v415, %v781
      %v1234 = vmul.f32 %v418, %v796
      %v1235 = vmul.f32 %v421, %v811
      %v1236 = vmul.f32 %v424, %v826
      %v1237 = vmul.f32 %v427, %v841
      %v1238 = vmul.f32 %v430, %v856
      %v1239 = vmul.f32 %v433, %v871
      %v1240 = vmul.f32 %v436, %v886
      %v1241 = vmul.f32 %v439, %v901
      %v1242 = vmul.f32 %v442, %v916
      %v1243 = vmul.f32 %v445, %v931
      %v1244 = vmul.f32 %v448, %v946
      %v1245 = vmul.f32 %v451, %v961
      %v1246 = vmul.f32 %v454, %v976
      %v1247 = vmul.f32 %v457, %v991
      %v1248 = vmul.f32 %v460, %v1006
      %v1249 = vmul.f32 %v463, %v1021
      %v1250 = vmul.f32 %v466, %v1036
      %v1251 = vmul.f32 %v469, %v1051
      %v1252 = vmul.f32 %v472, %v1066
      %v1253 = vmul.f32 %v475, %v1081
      %v1254 = vmul.f32 %v478, %v1096
      %v1255 = vmul.f32 %v481, %v1111
      %v1256 = vmul.f32 %v484, %v1126
      %v1257 = vmul.f32 %v487, %v1141
      %v1258 = vmul.f32 %v490, %v1156
      %v1259 = vmul.f32 %v493, %v1171
      %v1260 = vmul.f32 %v496, %v1186
      %v1261 = vmul.f32 %v499, %v1201
      %v1262 = vmul.f32 %v502, %v1216
      %v1263 = vmul.f32 %v505, %v1231
      %1264 = vst.msk [vmem:[%s249] sm:$0xff] %vm297, %v1232
      %1265 = vst.msk [vmem:[%s249 + $0x8] sm:$0xff] %vm297, %v1233
      %1266 = vst.msk [vmem:[%s249 + $0x10] sm:$0xff] %vm297, %v1234
      %1267 = vst.msk [vmem:[%s249 + $0x18] sm:$0xff] %vm297, %v1235
      %1268 = vst.msk [vmem:[%s249 + $0x20] sm:$0xff] %vm297, %v1236
      %1269 = vst.msk [vmem:[%s249 + $0x28] sm:$0xff] %vm297, %v1237
      %1270 = vst.msk [vmem:[%s249 + $0x30] sm:$0xff] %vm297, %v1238
      %1271 = vst.msk [vmem:[%s249 + $0x38] sm:$0xff] %vm297, %v1239
      %1272 = vst.msk [vmem:[%s249 + $0x40] sm:$0xff] %vm297, %v1240
      %1273 = vst.msk [vmem:[%s249 + $0x48] sm:$0xff] %vm297, %v1241
      %1274 = vst.msk [vmem:[%s249 + $0x50] sm:$0xff] %vm297, %v1242
      %1275 = vst.msk [vmem:[%s249 + $0x58] sm:$0xff] %vm297, %v1243
      %1276 = vst.msk [vmem:[%s249 + $0x60] sm:$0xff] %vm297, %v1244
      %1277 = vst.msk [vmem:[%s249 + $0x68] sm:$0xff] %vm297, %v1245
      %1278 = vst.msk [vmem:[%s249 + $0x70] sm:$0xff] %vm297, %v1246
      %1279 = vst.msk [vmem:[%s249 + $0x78] sm:$0xff] %vm297, %v1247
      %1280 = vst.msk [vmem:[%s249 + $0x80] sm:$0xff] %vm297, %v1248
      %1281 = vst.msk [vmem:[%s249 + $0x88] sm:$0xff] %vm297, %v1249
      %1282 = vst.msk [vmem:[%s249 + $0x90] sm:$0xff] %vm297, %v1250
      %1283 = vst.msk [vmem:[%s249 + $0x98] sm:$0xff] %vm297, %v1251
      %1284 = vst.msk [vmem:[%s249 + $0xa0] sm:$0xff] %vm297, %v1252
      %1285 = vst.msk [vmem:[%s249 + $0xa8] sm:$0xff] %vm297, %v1253
      %1286 = vst.msk [vmem:[%s249 + $0xb0] sm:$0xff] %vm297, %v1254
      %1287 = vst.msk [vmem:[%s249 + $0xb8] sm:$0xff] %vm297, %v1255
      %1288 = vst.msk [vmem:[%s249 + $0xc0] sm:$0xff] %vm297, %v1256
      %1289 = vst.msk [vmem:[%s249 + $0xc8] sm:$0xff] %vm297, %v1257
      %1290 = vst.msk [vmem:[%s249 + $0xd0] sm:$0xff] %vm297, %v1258
      %1291 = vst.msk [vmem:[%s249 + $0xd8] sm:$0xff] %vm297, %v1259
      %1292 = vst.msk [vmem:[%s249 + $0xe0] sm:$0xff] %vm297, %v1260
      %1293 = vst.msk [vmem:[%s249 + $0xe8] sm:$0xff] %vm297, %v1261
      %1294 = vst.msk [vmem:[%s249 + $0xf0] sm:$0xff] %vm297, %v1262
      %1295 = vst.msk [vmem:[%s249 + $0xf8] sm:$0xff] %vm297, %v1263
      %v1296 = vsub.f32 0.0, %v529
      %v1297 = vsub.f32 0.0, %v532
      %v1298 = vsub.f32 0.0, %v535
      %v1299 = vsub.f32 0.0, %v538
      %v1300 = vsub.f32 0.0, %v541
      %v1301 = vsub.f32 0.0, %v544
      %v1302 = vsub.f32 0.0, %v547
      %v1303 = vsub.f32 0.0, %v550
      %v1304 = vsub.f32 0.0, %v553
      %v1305 = vsub.f32 0.0, %v556
      %v1306 = vsub.f32 0.0, %v559
      %v1307 = vsub.f32 0.0, %v562
      %v1308 = vsub.f32 0.0, %v565
      %v1309 = vsub.f32 0.0, %v568
      %v1310 = vsub.f32 0.0, %v571
      %v1311 = vsub.f32 0.0, %v574
      %v1312 = vsub.f32 0.0, %v577
      %v1313 = vsub.f32 0.0, %v580
      %v1314 = vsub.f32 0.0, %v583
      %v1315 = vsub.f32 0.0, %v586
      %v1316 = vsub.f32 0.0, %v589
      %v1317 = vsub.f32 0.0, %v592
      %v1318 = vsub.f32 0.0, %v595
      %v1319 = vsub.f32 0.0, %v598
      %v1320 = vsub.f32 0.0, %v601
      %v1321 = vsub.f32 0.0, %v604
      %v1322 = vsub.f32 0.0, %v607
      %v1323 = vsub.f32 0.0, %v610
      %v1324 = vsub.f32 0.0, %v613
      %v1325 = vsub.f32 0.0, %v616
      %v1326 = vsub.f32 0.0, %v619
      %v1327 = vsub.f32 0.0, %v622
      %v1328 = vmul.f32 %v1296, 1.442695
      %v1329 = vpow.pop %v1328
      %v1330 = vmul.f32 %v1297, 1.442695
      %v1331 = vpow.pop %v1330
      %v1332 = vmul.f32 %v1298, 1.442695
      %v1333 = vpow.pop %v1332
      %v1334 = vmul.f32 %v1299, 1.442695
      %v1335 = vpow.pop %v1334
      %v1336 = vmul.f32 %v1300, 1.442695
      %v1337 = vpow.pop %v1336
      %v1338 = vmul.f32 %v1301, 1.442695
      %v1339 = vpow.pop %v1338
      %v1340 = vmul.f32 %v1302, 1.442695
      %v1341 = vpow.pop %v1340
      %v1342 = vmul.f32 %v1303, 1.442695
      %v1343 = vpow.pop %v1342
      %v1344 = vmul.f32 %v1304, 1.442695
      %v1345 = vpow.pop %v1344
      %v1346 = vmul.f32 %v1305, 1.442695
      %v1347 = vpow.pop %v1346
      %v1348 = vmul.f32 %v1306, 1.442695
      %v1349 = vpow.pop %v1348
      %v1350 = vmul.f32 %v1307, 1.442695
      %v1351 = vpow.pop %v1350
      %v1352 = vmul.f32 %v1308, 1.442695
      %v1353 = vpow.pop %v1352
      %v1354 = vmul.f32 %v1309, 1.442695
      %v1355 = vpow.pop %v1354
      %v1356 = vmul.f32 %v1310, 1.442695
      %v1357 = vpow.pop %v1356
      %v1358 = vmul.f32 %v1311, 1.442695
      %v1359 = vpow.pop %v1358
      %v1360 = vmul.f32 %v1312, 1.442695
      %v1361 = vpow.pop %v1360
      %v1362 = vmul.f32 %v1313, 1.442695
      %v1363 = vpow.pop %v1362
      %v1364 = vmul.f32 %v1314, 1.442695
      %v1365 = vpow.pop %v1364
      %v1366 = vmul.f32 %v1315, 1.442695
      %v1367 = vpow.pop %v1366
      %v1368 = vmul.f32 %v1316, 1.442695
      %v1369 = vpow.pop %v1368
      %v1370 = vmul.f32 %v1317, 1.442695
      %v1371 = vpow.pop %v1370
      %v1372 = vmul.f32 %v1318, 1.442695
      %v1373 = vpow.pop %v1372
      %v1374 = vmul.f32 %v1319, 1.442695
      %v1375 = vpow.pop %v1374
      %v1376 = vmul.f32 %v1320, 1.442695
      %v1377 = vpow.pop %v1376
      %v1378 = vmul.f32 %v1321, 1.442695
      %v1379 = vpow.pop %v1378
      %v1380 = vmul.f32 %v1322, 1.442695
      %v1381 = vpow.pop %v1380
      %v1382 = vmul.f32 %v1323, 1.442695
      %v1383 = vpow.pop %v1382
      %v1384 = vmul.f32 %v1324, 1.442695
      %v1385 = vpow.pop %v1384
      %v1386 = vmul.f32 %v1325, 1.442695
      %v1387 = vpow.pop %v1386
      %v1388 = vmul.f32 %v1326, 1.442695
      %v1389 = vpow.pop %v1388
      %v1390 = vmul.f32 %v1327, 1.442695
      %v1391 = vpow.pop %v1390
      %v1392 = vadd.f32 %v1329, 1.0
      %v1393 = vadd.f32 %v1331, 1.0
      %v1394 = vadd.f32 %v1333, 1.0
      %v1395 = vadd.f32 %v1335, 1.0
      %v1396 = vadd.f32 %v1337, 1.0
      %v1397 = vadd.f32 %v1339, 1.0
      %v1398 = vadd.f32 %v1341, 1.0
      %v1399 = vadd.f32 %v1343, 1.0
      %v1400 = vadd.f32 %v1345, 1.0
      %v1401 = vadd.f32 %v1347, 1.0
      %v1402 = vadd.f32 %v1349, 1.0
      %v1403 = vadd.f32 %v1351, 1.0
      %v1404 = vadd.f32 %v1353, 1.0
      %v1405 = vadd.f32 %v1355, 1.0
      %v1406 = vadd.f32 %v1357, 1.0
      %v1407 = vadd.f32 %v1359, 1.0
      %v1408 = vadd.f32 %v1361, 1.0
      %v1409 = vadd.f32 %v1363, 1.0
      %v1410 = vadd.f32 %v1365, 1.0
      %v1411 = vadd.f32 %v1367, 1.0
      %v1412 = vadd.f32 %v1369, 1.0
      %v1413 = vadd.f32 %v1371, 1.0
      %v1414 = vadd.f32 %v1373, 1.0
      %v1415 = vadd.f32 %v1375, 1.0
      %v1416 = vadd.f32 %v1377, 1.0
      %v1417 = vadd.f32 %v1379, 1.0
      %v1418 = vadd.f32 %v1381, 1.0
      %v1419 = vadd.f32 %v1383, 1.0
      %v1420 = vadd.f32 %v1385, 1.0
      %v1421 = vadd.f32 %v1387, 1.0
      %v1422 = vadd.f32 %v1389, 1.0
      %v1423 = vadd.f32 %v1391, 1.0
      %v1424 = vrcp.pop %v1392
      %v1425 = vmul.f32 %v1392, %v1424
      %v1426 = vsub.f32 1.0, %v1425
      %v1427 = vmul.f32 %v1424, %v1426
      %v1428 = vadd.f32 %v1424, %v1427
      %vm1429 = vweird.f32 %v1392
      %vm1430 = vweird.f32 %v1424
      %vm1431 = vmor %vm1429, %vm1430
      %v1432 = vsel %vm1431, %v1424, %v1428
      %v1433 = vand.u32 2147483647, %v1392
      %vm1434 = vcmp.eq.f32.partialorder %v1433, 8.507059e+37
      %v1435 = vand.u32 %v1392, 2147483648
      %v1436 = vor.u32 1.1754944e-38, %v1435
      %v1437 = vsel %vm1434, %v1436, %v1432
      %v1438 = vmul.f32 1.0, %v1437
      %v1439 = vrcp.pop %v1393
      %v1440 = vmul.f32 %v1393, %v1439
      %v1441 = vsub.f32 1.0, %v1440
      %v1442 = vmul.f32 %v1439, %v1441
      %v1443 = vadd.f32 %v1439, %v1442
      %vm1444 = vweird.f32 %v1393
      %vm1445 = vweird.f32 %v1439
      %vm1446 = vmor %vm1444, %vm1445
      %v1447 = vsel %vm1446, %v1439, %v1443
      %v1448 = vand.u32 2147483647, %v1393
      %vm1449 = vcmp.eq.f32.partialorder %v1448, 8.507059e+37
      %v1450 = vand.u32 %v1393, 2147483648
      %v1451 = vor.u32 1.1754944e-38, %v1450
      %v1452 = vsel %vm1449, %v1451, %v1447
      %v1453 = vmul.f32 1.0, %v1452
      %v1454 = vrcp.pop %v1394
      %v1455 = vmul.f32 %v1394, %v1454
      %v1456 = vsub.f32 1.0, %v1455
      %v1457 = vmul.f32 %v1454, %v1456
      %v1458 = vadd.f32 %v1454, %v1457
      %vm1459 = vweird.f32 %v1394
      %vm1460 = vweird.f32 %v1454
      %vm1461 = vmor %vm1459, %vm1460
      %v1462 = vsel %vm1461, %v1454, %v1458
      %v1463 = vand.u32 2147483647, %v1394
      %vm1464 = vcmp.eq.f32.partialorder %v1463, 8.507059e+37
      %v1465 = vand.u32 %v1394, 2147483648
      %v1466 = vor.u32 1.1754944e-38, %v1465
      %v1467 = vsel %vm1464, %v1466, %v1462
      %v1468 = vmul.f32 1.0, %v1467
      %v1469 = vrcp.pop %v1395
      %v1470 = vmul.f32 %v1395, %v1469
      %v1471 = vsub.f32 1.0, %v1470
      %v1472 = vmul.f32 %v1469, %v1471
      %v1473 = vadd.f32 %v1469, %v1472
      %vm1474 = vweird.f32 %v1395
      %vm1475 = vweird.f32 %v1469
      %vm1476 = vmor %vm1474, %vm1475
      %v1477 = vsel %vm1476, %v1469, %v1473
      %v1478 = vand.u32 2147483647, %v1395
      %vm1479 = vcmp.eq.f32.partialorder %v1478, 8.507059e+37
      %v1480 = vand.u32 %v1395, 2147483648
      %v1481 = vor.u32 1.1754944e-38, %v1480
      %v1482 = vsel %vm1479, %v1481, %v1477
      %v1483 = vmul.f32 1.0, %v1482
      %v1484 = vrcp.pop %v1396
      %v1485 = vmul.f32 %v1396, %v1484
      %v1486 = vsub.f32 1.0, %v1485
      %v1487 = vmul.f32 %v1484, %v1486
      %v1488 = vadd.f32 %v1484, %v1487
      %vm1489 = vweird.f32 %v1396
      %vm1490 = vweird.f32 %v1484
      %vm1491 = vmor %vm1489, %vm1490
      %v1492 = vsel %vm1491, %v1484, %v1488
      %v1493 = vand.u32 2147483647, %v1396
      %vm1494 = vcmp.eq.f32.partialorder %v1493, 8.507059e+37
      %v1495 = vand.u32 %v1396, 2147483648
      %v1496 = vor.u32 1.1754944e-38, %v1495
      %v1497 = vsel %vm1494, %v1496, %v1492
      %v1498 = vmul.f32 1.0, %v1497
      %v1499 = vrcp.pop %v1397
      %v1500 = vmul.f32 %v1397, %v1499
      %v1501 = vsub.f32 1.0, %v1500
      %v1502 = vmul.f32 %v1499, %v1501
      %v1503 = vadd.f32 %v1499, %v1502
      %vm1504 = vweird.f32 %v1397
      %vm1505 = vweird.f32 %v1499
      %vm1506 = vmor %vm1504, %vm1505
      %v1507 = vsel %vm1506, %v1499, %v1503
      %v1508 = vand.u32 2147483647, %v1397
      %vm1509 = vcmp.eq.f32.partialorder %v1508, 8.507059e+37
      %v1510 = vand.u32 %v1397, 2147483648
      %v1511 = vor.u32 1.1754944e-38, %v1510
      %v1512 = vsel %vm1509, %v1511, %v1507
      %v1513 = vmul.f32 1.0, %v1512
      %v1514 = vrcp.pop %v1398
      %v1515 = vmul.f32 %v1398, %v1514
      %v1516 = vsub.f32 1.0, %v1515
      %v1517 = vmul.f32 %v1514, %v1516
      %v1518 = vadd.f32 %v1514, %v1517
      %vm1519 = vweird.f32 %v1398
      %vm1520 = vweird.f32 %v1514
      %vm1521 = vmor %vm1519, %vm1520
      %v1522 = vsel %vm1521, %v1514, %v1518
      %v1523 = vand.u32 2147483647, %v1398
      %vm1524 = vcmp.eq.f32.partialorder %v1523, 8.507059e+37
      %v1525 = vand.u32 %v1398, 2147483648
      %v1526 = vor.u32 1.1754944e-38, %v1525
      %v1527 = vsel %vm1524, %v1526, %v1522
      %v1528 = vmul.f32 1.0, %v1527
      %v1529 = vrcp.pop %v1399
      %v1530 = vmul.f32 %v1399, %v1529
      %v1531 = vsub.f32 1.0, %v1530
      %v1532 = vmul.f32 %v1529, %v1531
      %v1533 = vadd.f32 %v1529, %v1532
      %vm1534 = vweird.f32 %v1399
      %vm1535 = vweird.f32 %v1529
      %vm1536 = vmor %vm1534, %vm1535
      %v1537 = vsel %vm1536, %v1529, %v1533
      %v1538 = vand.u32 2147483647, %v1399
      %vm1539 = vcmp.eq.f32.partialorder %v1538, 8.507059e+37
      %v1540 = vand.u32 %v1399, 2147483648
      %v1541 = vor.u32 1.1754944e-38, %v1540
      %v1542 = vsel %vm1539, %v1541, %v1537
      %v1543 = vmul.f32 1.0, %v1542
      %v1544 = vrcp.pop %v1400
      %v1545 = vmul.f32 %v1400, %v1544
      %v1546 = vsub.f32 1.0, %v1545
      %v1547 = vmul.f32 %v1544, %v1546
      %v1548 = vadd.f32 %v1544, %v1547
      %vm1549 = vweird.f32 %v1400
      %vm1550 = vweird.f32 %v1544
      %vm1551 = vmor %vm1549, %vm1550
      %v1552 = vsel %vm1551, %v1544, %v1548
      %v1553 = vand.u32 2147483647, %v1400
      %vm1554 = vcmp.eq.f32.partialorder %v1553, 8.507059e+37
      %v1555 = vand.u32 %v1400, 2147483648
      %v1556 = vor.u32 1.1754944e-38, %v1555
      %v1557 = vsel %vm1554, %v1556, %v1552
      %v1558 = vmul.f32 1.0, %v1557
      %v1559 = vrcp.pop %v1401
      %v1560 = vmul.f32 %v1401, %v1559
      %v1561 = vsub.f32 1.0, %v1560
      %v1562 = vmul.f32 %v1559, %v1561
      %v1563 = vadd.f32 %v1559, %v1562
      %vm1564 = vweird.f32 %v1401
      %vm1565 = vweird.f32 %v1559
      %vm1566 = vmor %vm1564, %vm1565
      %v1567 = vsel %vm1566, %v1559, %v1563
      %v1568 = vand.u32 2147483647, %v1401
      %vm1569 = vcmp.eq.f32.partialorder %v1568, 8.507059e+37
      %v1570 = vand.u32 %v1401, 2147483648
      %v1571 = vor.u32 1.1754944e-38, %v1570
      %v1572 = vsel %vm1569, %v1571, %v1567
      %v1573 = vmul.f32 1.0, %v1572
      %v1574 = vrcp.pop %v1402
      %v1575 = vmul.f32 %v1402, %v1574
      %v1576 = vsub.f32 1.0, %v1575
      %v1577 = vmul.f32 %v1574, %v1576
      %v1578 = vadd.f32 %v1574, %v1577
      %vm1579 = vweird.f32 %v1402
      %vm1580 = vweird.f32 %v1574
      %vm1581 = vmor %vm1579, %vm1580
      %v1582 = vsel %vm1581, %v1574, %v1578
      %v1583 = vand.u32 2147483647, %v1402
      %vm1584 = vcmp.eq.f32.partialorder %v1583, 8.507059e+37
      %v1585 = vand.u32 %v1402, 2147483648
      %v1586 = vor.u32 1.1754944e-38, %v1585
      %v1587 = vsel %vm1584, %v1586, %v1582
      %v1588 = vmul.f32 1.0, %v1587
      %v1589 = vrcp.pop %v1403
      %v1590 = vmul.f32 %v1403, %v1589
      %v1591 = vsub.f32 1.0, %v1590
      %v1592 = vmul.f32 %v1589, %v1591
      %v1593 = vadd.f32 %v1589, %v1592
      %vm1594 = vweird.f32 %v1403
      %vm1595 = vweird.f32 %v1589
      %vm1596 = vmor %vm1594, %vm1595
      %v1597 = vsel %vm1596, %v1589, %v1593
      %v1598 = vand.u32 2147483647, %v1403
      %vm1599 = vcmp.eq.f32.partialorder %v1598, 8.507059e+37
      %v1600 = vand.u32 %v1403, 2147483648
      %v1601 = vor.u32 1.1754944e-38, %v1600
      %v1602 = vsel %vm1599, %v1601, %v1597
      %v1603 = vmul.f32 1.0, %v1602
      %v1604 = vrcp.pop %v1404
      %v1605 = vmul.f32 %v1404, %v1604
      %v1606 = vsub.f32 1.0, %v1605
      %v1607 = vmul.f32 %v1604, %v1606
      %v1608 = vadd.f32 %v1604, %v1607
      %vm1609 = vweird.f32 %v1404
      %vm1610 = vweird.f32 %v1604
      %vm1611 = vmor %vm1609, %vm1610
      %v1612 = vsel %vm1611, %v1604, %v1608
      %v1613 = vand.u32 2147483647, %v1404
      %vm1614 = vcmp.eq.f32.partialorder %v1613, 8.507059e+37
      %v1615 = vand.u32 %v1404, 2147483648
      %v1616 = vor.u32 1.1754944e-38, %v1615
      %v1617 = vsel %vm1614, %v1616, %v1612
      %v1618 = vmul.f32 1.0, %v1617
      %v1619 = vrcp.pop %v1405
      %v1620 = vmul.f32 %v1405, %v1619
      %v1621 = vsub.f32 1.0, %v1620
      %v1622 = vmul.f32 %v1619, %v1621
      %v1623 = vadd.f32 %v1619, %v1622
      %vm1624 = vweird.f32 %v1405
      %vm1625 = vweird.f32 %v1619
      %vm1626 = vmor %vm1624, %vm1625
      %v1627 = vsel %vm1626, %v1619, %v1623
      %v1628 = vand.u32 2147483647, %v1405
      %vm1629 = vcmp.eq.f32.partialorder %v1628, 8.507059e+37
      %v1630 = vand.u32 %v1405, 2147483648
      %v1631 = vor.u32 1.1754944e-38, %v1630
      %v1632 = vsel %vm1629, %v1631, %v1627
      %v1633 = vmul.f32 1.0, %v1632
      %v1634 = vrcp.pop %v1406
      %v1635 = vmul.f32 %v1406, %v1634
      %v1636 = vsub.f32 1.0, %v1635
      %v1637 = vmul.f32 %v1634, %v1636
      %v1638 = vadd.f32 %v1634, %v1637
      %vm1639 = vweird.f32 %v1406
      %vm1640 = vweird.f32 %v1634
      %vm1641 = vmor %vm1639, %vm1640
      %v1642 = vsel %vm1641, %v1634, %v1638
      %v1643 = vand.u32 2147483647, %v1406
      %vm1644 = vcmp.eq.f32.partialorder %v1643, 8.507059e+37
      %v1645 = vand.u32 %v1406, 2147483648
      %v1646 = vor.u32 1.1754944e-38, %v1645
      %v1647 = vsel %vm1644, %v1646, %v1642
      %v1648 = vmul.f32 1.0, %v1647
      %v1649 = vrcp.pop %v1407
      %v1650 = vmul.f32 %v1407, %v1649
      %v1651 = vsub.f32 1.0, %v1650
      %v1652 = vmul.f32 %v1649, %v1651
      %v1653 = vadd.f32 %v1649, %v1652
      %vm1654 = vweird.f32 %v1407
      %vm1655 = vweird.f32 %v1649
      %vm1656 = vmor %vm1654, %vm1655
      %v1657 = vsel %vm1656, %v1649, %v1653
      %v1658 = vand.u32 2147483647, %v1407
      %vm1659 = vcmp.eq.f32.partialorder %v1658, 8.507059e+37
      %v1660 = vand.u32 %v1407, 2147483648
      %v1661 = vor.u32 1.1754944e-38, %v1660
      %v1662 = vsel %vm1659, %v1661, %v1657
      %v1663 = vmul.f32 1.0, %v1662
      %v1664 = vrcp.pop %v1408
      %v1665 = vmul.f32 %v1408, %v1664
      %v1666 = vsub.f32 1.0, %v1665
      %v1667 = vmul.f32 %v1664, %v1666
      %v1668 = vadd.f32 %v1664, %v1667
      %vm1669 = vweird.f32 %v1408
      %vm1670 = vweird.f32 %v1664
      %vm1671 = vmor %vm1669, %vm1670
      %v1672 = vsel %vm1671, %v1664, %v1668
      %v1673 = vand.u32 2147483647, %v1408
      %vm1674 = vcmp.eq.f32.partialorder %v1673, 8.507059e+37
      %v1675 = vand.u32 %v1408, 2147483648
      %v1676 = vor.u32 1.1754944e-38, %v1675
      %v1677 = vsel %vm1674, %v1676, %v1672
      %v1678 = vmul.f32 1.0, %v1677
      %v1679 = vrcp.pop %v1409
      %v1680 = vmul.f32 %v1409, %v1679
      %v1681 = vsub.f32 1.0, %v1680
      %v1682 = vmul.f32 %v1679, %v1681
      %v1683 = vadd.f32 %v1679, %v1682
      %vm1684 = vweird.f32 %v1409
      %vm1685 = vweird.f32 %v1679
      %vm1686 = vmor %vm1684, %vm1685
      %v1687 = vsel %vm1686, %v1679, %v1683
      %v1688 = vand.u32 2147483647, %v1409
      %vm1689 = vcmp.eq.f32.partialorder %v1688, 8.507059e+37
      %v1690 = vand.u32 %v1409, 2147483648
      %v1691 = vor.u32 1.1754944e-38, %v1690
      %v1692 = vsel %vm1689, %v1691, %v1687
      %v1693 = vmul.f32 1.0, %v1692
      %v1694 = vrcp.pop %v1410
      %v1695 = vmul.f32 %v1410, %v1694
      %v1696 = vsub.f32 1.0, %v1695
      %v1697 = vmul.f32 %v1694, %v1696
      %v1698 = vadd.f32 %v1694, %v1697
      %vm1699 = vweird.f32 %v1410
      %vm1700 = vweird.f32 %v1694
      %vm1701 = vmor %vm1699, %vm1700
      %v1702 = vsel %vm1701, %v1694, %v1698
      %v1703 = vand.u32 2147483647, %v1410
      %vm1704 = vcmp.eq.f32.partialorder %v1703, 8.507059e+37
      %v1705 = vand.u32 %v1410, 2147483648
      %v1706 = vor.u32 1.1754944e-38, %v1705
      %v1707 = vsel %vm1704, %v1706, %v1702
      %v1708 = vmul.f32 1.0, %v1707
      %v1709 = vrcp.pop %v1411
      %v1710 = vmul.f32 %v1411, %v1709
      %v1711 = vsub.f32 1.0, %v1710
      %v1712 = vmul.f32 %v1709, %v1711
      %v1713 = vadd.f32 %v1709, %v1712
      %vm1714 = vweird.f32 %v1411
      %vm1715 = vweird.f32 %v1709
      %vm1716 = vmor %vm1714, %vm1715
      %v1717 = vsel %vm1716, %v1709, %v1713
      %v1718 = vand.u32 2147483647, %v1411
      %vm1719 = vcmp.eq.f32.partialorder %v1718, 8.507059e+37
      %v1720 = vand.u32 %v1411, 2147483648
      %v1721 = vor.u32 1.1754944e-38, %v1720
      %v1722 = vsel %vm1719, %v1721, %v1717
      %v1723 = vmul.f32 1.0, %v1722
      %v1724 = vrcp.pop %v1412
      %v1725 = vmul.f32 %v1412, %v1724
      %v1726 = vsub.f32 1.0, %v1725
      %v1727 = vmul.f32 %v1724, %v1726
      %v1728 = vadd.f32 %v1724, %v1727
      %vm1729 = vweird.f32 %v1412
      %vm1730 = vweird.f32 %v1724
      %vm1731 = vmor %vm1729, %vm1730
      %v1732 = vsel %vm1731, %v1724, %v1728
      %v1733 = vand.u32 2147483647, %v1412
      %vm1734 = vcmp.eq.f32.partialorder %v1733, 8.507059e+37
      %v1735 = vand.u32 %v1412, 2147483648
      %v1736 = vor.u32 1.1754944e-38, %v1735
      %v1737 = vsel %vm1734, %v1736, %v1732
      %v1738 = vmul.f32 1.0, %v1737
      %v1739 = vrcp.pop %v1413
      %v1740 = vmul.f32 %v1413, %v1739
      %v1741 = vsub.f32 1.0, %v1740
      %v1742 = vmul.f32 %v1739, %v1741
      %v1743 = vadd.f32 %v1739, %v1742
      %vm1744 = vweird.f32 %v1413
      %vm1745 = vweird.f32 %v1739
      %vm1746 = vmor %vm1744, %vm1745
      %v1747 = vsel %vm1746, %v1739, %v1743
      %v1748 = vand.u32 2147483647, %v1413
      %vm1749 = vcmp.eq.f32.partialorder %v1748, 8.507059e+37
      %v1750 = vand.u32 %v1413, 2147483648
      %v1751 = vor.u32 1.1754944e-38, %v1750
      %v1752 = vsel %vm1749, %v1751, %v1747
      %v1753 = vmul.f32 1.0, %v1752
      %v1754 = vrcp.pop %v1414
      %v1755 = vmul.f32 %v1414, %v1754
      %v1756 = vsub.f32 1.0, %v1755
      %v1757 = vmul.f32 %v1754, %v1756
      %v1758 = vadd.f32 %v1754, %v1757
      %vm1759 = vweird.f32 %v1414
      %vm1760 = vweird.f32 %v1754
      %vm1761 = vmor %vm1759, %vm1760
      %v1762 = vsel %vm1761, %v1754, %v1758
      %v1763 = vand.u32 2147483647, %v1414
      %vm1764 = vcmp.eq.f32.partialorder %v1763, 8.507059e+37
      %v1765 = vand.u32 %v1414, 2147483648
      %v1766 = vor.u32 1.1754944e-38, %v1765
      %v1767 = vsel %vm1764, %v1766, %v1762
      %v1768 = vmul.f32 1.0, %v1767
      %v1769 = vrcp.pop %v1415
      %v1770 = vmul.f32 %v1415, %v1769
      %v1771 = vsub.f32 1.0, %v1770
      %v1772 = vmul.f32 %v1769, %v1771
      %v1773 = vadd.f32 %v1769, %v1772
      %vm1774 = vweird.f32 %v1415
      %vm1775 = vweird.f32 %v1769
      %vm1776 = vmor %vm1774, %vm1775
      %v1777 = vsel %vm1776, %v1769, %v1773
      %v1778 = vand.u32 2147483647, %v1415
      %vm1779 = vcmp.eq.f32.partialorder %v1778, 8.507059e+37
      %v1780 = vand.u32 %v1415, 2147483648
      %v1781 = vor.u32 1.1754944e-38, %v1780
      %v1782 = vsel %vm1779, %v1781, %v1777
      %v1783 = vmul.f32 1.0, %v1782
      %v1784 = vrcp.pop %v1416
      %v1785 = vmul.f32 %v1416, %v1784
      %v1786 = vsub.f32 1.0, %v1785
      %v1787 = vmul.f32 %v1784, %v1786
      %v1788 = vadd.f32 %v1784, %v1787
      %vm1789 = vweird.f32 %v1416
      %vm1790 = vweird.f32 %v1784
      %vm1791 = vmor %vm1789, %vm1790
      %v1792 = vsel %vm1791, %v1784, %v1788
      %v1793 = vand.u32 2147483647, %v1416
      %vm1794 = vcmp.eq.f32.partialorder %v1793, 8.507059e+37
      %v1795 = vand.u32 %v1416, 2147483648
      %v1796 = vor.u32 1.1754944e-38, %v1795
      %v1797 = vsel %vm1794, %v1796, %v1792
      %v1798 = vmul.f32 1.0, %v1797
      %v1799 = vrcp.pop %v1417
      %v1800 = vmul.f32 %v1417, %v1799
      %v1801 = vsub.f32 1.0, %v1800
      %v1802 = vmul.f32 %v1799, %v1801
      %v1803 = vadd.f32 %v1799, %v1802
      %vm1804 = vweird.f32 %v1417
      %vm1805 = vweird.f32 %v1799
      %vm1806 = vmor %vm1804, %vm1805
      %v1807 = vsel %vm1806, %v1799, %v1803
      %v1808 = vand.u32 2147483647, %v1417
      %vm1809 = vcmp.eq.f32.partialorder %v1808, 8.507059e+37
      %v1810 = vand.u32 %v1417, 2147483648
      %v1811 = vor.u32 1.1754944e-38, %v1810
      %v1812 = vsel %vm1809, %v1811, %v1807
      %v1813 = vmul.f32 1.0, %v1812
      %v1814 = vrcp.pop %v1418
      %v1815 = vmul.f32 %v1418, %v1814
      %v1816 = vsub.f32 1.0, %v1815
      %v1817 = vmul.f32 %v1814, %v1816
      %v1818 = vadd.f32 %v1814, %v1817
      %vm1819 = vweird.f32 %v1418
      %vm1820 = vweird.f32 %v1814
      %vm1821 = vmor %vm1819, %vm1820
      %v1822 = vsel %vm1821, %v1814, %v1818
      %v1823 = vand.u32 2147483647, %v1418
      %vm1824 = vcmp.eq.f32.partialorder %v1823, 8.507059e+37
      %v1825 = vand.u32 %v1418, 2147483648
      %v1826 = vor.u32 1.1754944e-38, %v1825
      %v1827 = vsel %vm1824, %v1826, %v1822
      %v1828 = vmul.f32 1.0, %v1827
      %v1829 = vrcp.pop %v1419
      %v1830 = vmul.f32 %v1419, %v1829
      %v1831 = vsub.f32 1.0, %v1830
      %v1832 = vmul.f32 %v1829, %v1831
      %v1833 = vadd.f32 %v1829, %v1832
      %vm1834 = vweird.f32 %v1419
      %vm1835 = vweird.f32 %v1829
      %vm1836 = vmor %vm1834, %vm1835
      %v1837 = vsel %vm1836, %v1829, %v1833
      %v1838 = vand.u32 2147483647, %v1419
      %vm1839 = vcmp.eq.f32.partialorder %v1838, 8.507059e+37
      %v1840 = vand.u32 %v1419, 2147483648
      %v1841 = vor.u32 1.1754944e-38, %v1840
      %v1842 = vsel %vm1839, %v1841, %v1837
      %v1843 = vmul.f32 1.0, %v1842
      %v1844 = vrcp.pop %v1420
      %v1845 = vmul.f32 %v1420, %v1844
      %v1846 = vsub.f32 1.0, %v1845
      %v1847 = vmul.f32 %v1844, %v1846
      %v1848 = vadd.f32 %v1844, %v1847
      %vm1849 = vweird.f32 %v1420
      %vm1850 = vweird.f32 %v1844
      %vm1851 = vmor %vm1849, %vm1850
      %v1852 = vsel %vm1851, %v1844, %v1848
      %v1853 = vand.u32 2147483647, %v1420
      %vm1854 = vcmp.eq.f32.partialorder %v1853, 8.507059e+37
      %v1855 = vand.u32 %v1420, 2147483648
      %v1856 = vor.u32 1.1754944e-38, %v1855
      %v1857 = vsel %vm1854, %v1856, %v1852
      %v1858 = vmul.f32 1.0, %v1857
      %v1859 = vrcp.pop %v1421
      %v1860 = vmul.f32 %v1421, %v1859
      %v1861 = vsub.f32 1.0, %v1860
      %v1862 = vmul.f32 %v1859, %v1861
      %v1863 = vadd.f32 %v1859, %v1862
      %vm1864 = vweird.f32 %v1421
      %vm1865 = vweird.f32 %v1859
      %vm1866 = vmor %vm1864, %vm1865
      %v1867 = vsel %vm1866, %v1859, %v1863
      %v1868 = vand.u32 2147483647, %v1421
      %vm1869 = vcmp.eq.f32.partialorder %v1868, 8.507059e+37
      %v1870 = vand.u32 %v1421, 2147483648
      %v1871 = vor.u32 1.1754944e-38, %v1870
      %v1872 = vsel %vm1869, %v1871, %v1867
      %v1873 = vmul.f32 1.0, %v1872
      %v1874 = vrcp.pop %v1422
      %v1875 = vmul.f32 %v1422, %v1874
      %v1876 = vsub.f32 1.0, %v1875
      %v1877 = vmul.f32 %v1874, %v1876
      %v1878 = vadd.f32 %v1874, %v1877
      %vm1879 = vweird.f32 %v1422
      %vm1880 = vweird.f32 %v1874
      %vm1881 = vmor %vm1879, %vm1880
      %v1882 = vsel %vm1881, %v1874, %v1878
      %v1883 = vand.u32 2147483647, %v1422
      %vm1884 = vcmp.eq.f32.partialorder %v1883, 8.507059e+37
      %v1885 = vand.u32 %v1422, 2147483648
      %v1886 = vor.u32 1.1754944e-38, %v1885
      %v1887 = vsel %vm1884, %v1886, %v1882
      %v1888 = vmul.f32 1.0, %v1887
      %v1889 = vrcp.pop %v1423
      %v1890 = vmul.f32 %v1423, %v1889
      %v1891 = vsub.f32 1.0, %v1890
      %v1892 = vmul.f32 %v1889, %v1891
      %v1893 = vadd.f32 %v1889, %v1892
      %vm1894 = vweird.f32 %v1423
      %vm1895 = vweird.f32 %v1889
      %vm1896 = vmor %vm1894, %vm1895
      %v1897 = vsel %vm1896, %v1889, %v1893
      %v1898 = vand.u32 2147483647, %v1423
      %vm1899 = vcmp.eq.f32.partialorder %v1898, 8.507059e+37
      %v1900 = vand.u32 %v1423, 2147483648
      %v1901 = vor.u32 1.1754944e-38, %v1900
      %v1902 = vsel %vm1899, %v1901, %v1897
      %v1903 = vmul.f32 1.0, %v1902
      %v1904 = vmul.f32 %v529, %v1438
      %v1905 = vmul.f32 %v532, %v1453
      %v1906 = vmul.f32 %v535, %v1468
      %v1907 = vmul.f32 %v538, %v1483
      %v1908 = vmul.f32 %v541, %v1498
      %v1909 = vmul.f32 %v544, %v1513
      %v1910 = vmul.f32 %v547, %v1528
      %v1911 = vmul.f32 %v550, %v1543
      %v1912 = vmul.f32 %v553, %v1558
      %v1913 = vmul.f32 %v556, %v1573
      %v1914 = vmul.f32 %v559, %v1588
      %v1915 = vmul.f32 %v562, %v1603
      %v1916 = vmul.f32 %v565, %v1618
      %v1917 = vmul.f32 %v568, %v1633
      %v1918 = vmul.f32 %v571, %v1648
      %v1919 = vmul.f32 %v574, %v1663
      %v1920 = vmul.f32 %v577, %v1678
      %v1921 = vmul.f32 %v580, %v1693
      %v1922 = vmul.f32 %v583, %v1708
      %v1923 = vmul.f32 %v586, %v1723
      %v1924 = vmul.f32 %v589, %v1738
      %v1925 = vmul.f32 %v592, %v1753
      %v1926 = vmul.f32 %v595, %v1768
      %v1927 = vmul.f32 %v598, %v1783
      %v1928 = vmul.f32 %v601, %v1798
      %v1929 = vmul.f32 %v604, %v1813
      %v1930 = vmul.f32 %v607, %v1828
      %v1931 = vmul.f32 %v610, %v1843
      %v1932 = vmul.f32 %v613, %v1858
      %v1933 = vmul.f32 %v616, %v1873
      %v1934 = vmul.f32 %v619, %v1888
      %v1935 = vmul.f32 %v622, %v1903
      %1936 = vst.msk [vmem:[%s259] sm:$0xff] %vm297, %v1904
      %1937 = vst.msk [vmem:[%s259 + $0x8] sm:$0xff] %vm297, %v1905
      %1938 = vst.msk [vmem:[%s259 + $0x10] sm:$0xff] %vm297, %v1906
      %1939 = vst.msk [vmem:[%s259 + $0x18] sm:$0xff] %vm297, %v1907
      %1940 = vst.msk [vmem:[%s259 + $0x20] sm:$0xff] %vm297, %v1908
      %1941 = vst.msk [vmem:[%s259 + $0x28] sm:$0xff] %vm297, %v1909
      %1942 = vst.msk [vmem:[%s259 + $0x30] sm:$0xff] %vm297, %v1910
      %1943 = vst.msk [vmem:[%s259 + $0x38] sm:$0xff] %vm297, %v1911
      %1944 = vst.msk [vmem:[%s259 + $0x40] sm:$0xff] %vm297, %v1912
      %1945 = vst.msk [vmem:[%s259 + $0x48] sm:$0xff] %vm297, %v1913
      %1946 = vst.msk [vmem:[%s259 + $0x50] sm:$0xff] %vm297, %v1914
      %1947 = vst.msk [vmem:[%s259 + $0x58] sm:$0xff] %vm297, %v1915
      %1948 = vst.msk [vmem:[%s259 + $0x60] sm:$0xff] %vm297, %v1916
      %1949 = vst.msk [vmem:[%s259 + $0x68] sm:$0xff] %vm297, %v1917
      %1950 = vst.msk [vmem:[%s259 + $0x70] sm:$0xff] %vm297, %v1918
      %1951 = vst.msk [vmem:[%s259 + $0x78] sm:$0xff] %vm297, %v1919
      %1952 = vst.msk [vmem:[%s259 + $0x80] sm:$0xff] %vm297, %v1920
      %1953 = vst.msk [vmem:[%s259 + $0x88] sm:$0xff] %vm297, %v1921
      %1954 = vst.msk [vmem:[%s259 + $0x90] sm:$0xff] %vm297, %v1922
      %1955 = vst.msk [vmem:[%s259 + $0x98] sm:$0xff] %vm297, %v1923
      %1956 = vst.msk [vmem:[%s259 + $0xa0] sm:$0xff] %vm297, %v1924
      %1957 = vst.msk [vmem:[%s259 + $0xa8] sm:$0xff] %vm297, %v1925
      %1958 = vst.msk [vmem:[%s259 + $0xb0] sm:$0xff] %vm297, %v1926
      %1959 = vst.msk [vmem:[%s259 + $0xb8] sm:$0xff] %vm297, %v1927
      %1960 = vst.msk [vmem:[%s259 + $0xc0] sm:$0xff] %vm297, %v1928
      %1961 = vst.msk [vmem:[%s259 + $0xc8] sm:$0xff] %vm297, %v1929
      %1962 = vst.msk [vmem:[%s259 + $0xd0] sm:$0xff] %vm297, %v1930
      %1963 = vst.msk [vmem:[%s259 + $0xd8] sm:$0xff] %vm297, %v1931
      %1964 = vst.msk [vmem:[%s259 + $0xe0] sm:$0xff] %vm297, %v1932
      %1965 = vst.msk [vmem:[%s259 + $0xe8] sm:$0xff] %vm297, %v1933
      %1966 = vst.msk [vmem:[%s259 + $0xf0] sm:$0xff] %vm297, %v1934
      %1967 = vst.msk [vmem:[%s259 + $0xf8] sm:$0xff] %vm297, %v1935
      %s1968 = smul.u32 32, %s21
      %p1969 = scmp.lt.s32.totalorder %s20, 1
      %s1970 = scalar_select %p1969, %s20, 1
      %p1971 = scmp.lt.s32.totalorder %s1968, 31
      %s1972 = scalar_select %p1971, %s1968, 31
      %s1973 = smul.addr %s1970, 32
      %s1974 = sadd.s32 %s1972, %s1973
      %s1975 = smul.addr %s1974, 8
      %s1976 = scalar_lea.vmem %s3, %s1975
      %s1977 = smul.u32 32, %s21
      %p1978 = scmp.lt.s32.totalorder %s20, 1
      %s1979 = scalar_select %p1978, %s20, 1
      %p1980 = scmp.lt.s32.totalorder %s1977, 31
      %s1981 = scalar_select %p1980, %s1977, 31
      %s1982 = smul.addr %s1979, 32
      %s1983 = sadd.s32 %s1981, %s1982
      %s1984 = smul.addr %s1983, 8
      %s1985 = scalar_lea.vmem %s4, %s1984
      // Predicated region
      $region33: #{tpu_custom_call.1} parent=31 // pred_check
        %p1986 = pneg %p118
      $region34: #{tpu_custom_call.1} parent=31 // pred_check_branch
        %1988 = sbr.rel (%p1986) target = $region36
      $region35: #{tpu_custom_call.1} parent=31 // pred_region
        %s1989 = smul.u32 32, %s21
      $region36: #{tpu_custom_call.1} parent=31 // pred_fallthru
        _
      // Predicated region
      $region37: #{tpu_custom_call.1} parent=31 // pred_check
        %p1990 = pneg %p146
      $region38: #{tpu_custom_call.1} parent=31 // pred_check_branch
        %1992 = sbr.rel (%p1990) target = $region40
      $region39: #{tpu_custom_call.1} parent=31 // pred_region
        %s1993 = smul.u32 32, %s21
      $region40: #{tpu_custom_call.1} parent=31 // pred_fallthru
        _
    $region32: #{tpu_custom_call.1} parent=5 // pred_fallthru
      _
    %p1994 = scmp.le.s32.totalorder 2, %s11
    // Predicated region
    $region41: #{tpu_custom_call.1} parent=5 // pred_check
      %p1995 = pneg %p1994
    $region42: #{tpu_custom_call.1} parent=5 // pred_check_branch
      %1997 = sbr.rel (%p1995) target = $region44
    $region43: #{tpu_custom_call.1} parent=5 // pred_region
      %s1998 = ssub.s32 %s11, 2
      // Predicated region
      $region45: #{tpu_custom_call.1} parent=43 // pred_check
        %p1999 = pneg %p124
      $region46: #{tpu_custom_call.1} parent=43 // pred_check_branch
        %2001 = sbr.rel (%p1999) target = $region48
      $region47: #{tpu_custom_call.1} parent=43 // pred_region
        %s2002 = smul.u32 32, %s23
        %p2003 = scmp.lt.s32.totalorder %s22, 1
        %s2004 = scalar_select %p2003, %s22, 1
        %p2005 = scmp.lt.s32.totalorder %s2002, 31
        %s2006 = scalar_select %p2005, %s2002, 31
        %s2007 = smul.addr %s2004, 32
        %s2008 = sadd.s32 %s2006, %s2007
        %s2009 = smul.addr %s2008, 8
        %s2010 = scalar_lea.vmem %s3, %s2009
      $region48: #{tpu_custom_call.1} parent=43 // pred_fallthru
        _
      // Predicated region
      $region49: #{tpu_custom_call.1} parent=43 // pred_check
        %p2011 = pneg %p152
      $region50: #{tpu_custom_call.1} parent=43 // pred_check_branch
        %2013 = sbr.rel (%p2011) target = $region52
      $region51: #{tpu_custom_call.1} parent=43 // pred_region
        %s2014 = smul.u32 32, %s23
        %p2015 = scmp.lt.s32.totalorder %s22, 1
        %s2016 = scalar_select %p2015, %s22, 1
        %p2017 = scmp.lt.s32.totalorder %s2014, 31
        %s2018 = scalar_select %p2017, %s2014, 31
        %s2019 = smul.addr %s2016, 32
        %s2020 = sadd.s32 %s2018, %s2019
        %s2021 = smul.addr %s2020, 8
        %s2022 = scalar_lea.vmem %s4, %s2021
      $region52: #{tpu_custom_call.1} parent=43 // pred_fallthru
        _
    $region44: #{tpu_custom_call.1} parent=5 // pred_fallthru
      _
  $region6: #{tpu_custom_call.1} parent=0 // loop_footer
    %s15 = sadd.s32 1, %s11
  $region7: #{tpu_custom_call.1} parent=0 // loop_footer_branch
    %10 = sbr.rel target = $region3
  $region8: #{tpu_custom_call.1} parent=0 // loop_exit
    _

</llo_original>
